<compile_context>
chip_gen: v6e
topology: v6e:2x2x1
jax: 0.10.0
libtpu: 0.0.40
codegen_flags: <defaults>
</compile_context>

<pallas_src>
import jax
import jax.numpy as jnp
from jax import lax
from jax.experimental import pallas as pl
from jax.experimental.pallas import tpu as pltpu

_CDT = jnp.bfloat16    # HBM / MXU activation + weight dtype (f32 accumulation)


def _silu(z):
    # z is f32 (post-accumulation).  exp runs on the EUP; the exact divide
    # keeps numerics tight.  pl.reciprocal(..., approx=True) is available if
    # a bundle dump ever shows VALU saturation.
    return z * (1.0 / (1.0 + jnp.exp(-z)))


# ---------------------------------------------------------------------------
# Fused kernel: maxpool+1x1conv  ||  1x1conv -> 3x3/s2 conv  ||  concat
# ---------------------------------------------------------------------------
def _downsample_kernel(x_ref, halo_ref, w1_ref, b1_ref, w2a_ref, b2a_ref,
                       w2b_ref, b2b_ref, o_ref, yev_ref, yod_ref):
    two_th = x_ref.shape[1]          # 2 * TH input rows per tile
    th = two_th // 2                 # TH output rows per tile
    wo = x_ref.shape[2]              # W // 2
    c = w1_ref.shape[0]              # in_dim
    cm = w1_ref.shape[1]             # inter_dim

    # Input block is channel-paired: last dim = [x[.., 2w, :] | x[.., 2w+1, :]].
    xe = x_ref[0, :, :, :c]          # even columns  (2*TH, Wo, C)  bf16
    xo = x_ref[0, :, :, c:]          # odd  columns  (2*TH, Wo, C)  bf16

    # ---- branch 1: MaxPool2d(2,2) + 1x1 conv (+BN) + SiLU ------------------
    cmax = jnp.maximum(xe, xo)                       # pool over width
    rows = cmax.reshape(th, 2, wo, c)
    pooled = jnp.maximum(rows[:, 0], rows[:, 1])     # pool over height
    z1 = jnp.dot(pooled.reshape(th * wo, c), w1_ref[...],
                 preferred_element_type=jnp.float32) + b1_ref[...]
    x1 = _silu(z1)                                   # (TH*Wo, Cm) f32

    # ---- branch 2 / stage 1: 1x1 conv (+BN) + SiLU on full resolution ------
    w2a = w2a_ref[...]
    b2a = b2a_ref[...]
    y_e = _silu(jnp.dot(xe.reshape(two_th * wo, c), w2a,
                        preferred_element_type=jnp.float32) + b2a)
    y_o = _silu(jnp.dot(xo.reshape(two_th * wo, c), w2a,
                        preferred_element_type=jnp.float32) + b2a)

    # Recompute the single y row above this tile (y row 2*TH*i - 1): the 3x3
    # conv's top halo.  Tile 0 reads a clamped real x row, but the keep mask
    # zeroes it, reproducing the conv's zero top padding.
    keep = (pl.program_id(1) > 0).astype(jnp.float32)
    hrow = halo_ref[0, 0, :, :]                      # (Wo, 2*C) bf16
    yh_e = _silu(jnp.dot(hrow[:, :c], w2a,
                         preferred_element_type=jnp.float32) + b2a) * keep
    yh_o = _silu(jnp.dot(hrow[:, c:], w2a,
                         preferred_element_type=jnp.float32) + b2a) * keep

    # Column-deinterleaved, bf16 y window in aligned VMEM scratch:
    #   yev[r, p] = y[base + r, 2p]      yod[r, q] = y[base + r, 2q + 1]
    # with base = 2*TH*i - 1 (the halo row).  All stores are full-width and
    # sublane/lane aligned.
    yev_ref[0, :, :] = yh_e.astype(yev_ref.dtype)
    yod_ref[0, :, :] = yh_o.astype(yod_ref.dtype)
    yev_ref[1:two_th + 1, :, :] = y_e.astype(yev_ref.dtype).reshape(two_th, wo, cm)
    yod_ref[1:two_th + 1, :, :] = y_o.astype(yod_ref.dtype).reshape(two_th, wo, cm)

    yev = yev_ref[...]
    yod = yod_ref[...]
    # kw = 0 needs y col 2*ow - 1: shift the odd columns right by one on the
    # XLU (pltpu.roll) and zero column 0 (the conv's left zero padding).
    # The roll is done on an f32 copy (portable on all Mosaic versions).
    rolled = pltpu.roll(yod.astype(jnp.float32), shift=1, axis=1)
    col_ids = lax.broadcasted_iota(jnp.int32, rolled.shape, 1)
    yshift = jnp.where(col_ids == 0, 0.0, rolled).astype(yod.dtype)

    # ---- branch 2 / stage 2: 3x3, stride 2, pad 1 conv (+BN) + SiLU --------
    # Output (r, ow) reads window rows {2r + kh} and y cols {2*ow - 1 + kw}.
    # Per kw, the three kh taps are stacked along the contraction axis so the
    # whole conv is 3 fat (TH*Wo, 3*Cm) x (3*Cm, Cm) matmuls.
    def taps(col):                                   # col: (2*TH+1, Wo, Cm)
        lo = col[0:two_th].reshape(th, 2, wo, cm)
        hi = col[1:two_th + 1].reshape(th, 2, wo, cm)
        return jnp.concatenate([lo[:, 0], lo[:, 1], hi[:, 1]],
                               axis=-1).reshape(th * wo, 3 * cm)

    acc = (jnp.dot(taps(yshift), w2b_ref[0], preferred_element_type=jnp.float32)
           + jnp.dot(taps(yev), w2b_ref[1], preferred_element_type=jnp.float32)
           + jnp.dot(taps(yod), w2b_ref[2], preferred_element_type=jnp.float32))
    x2 = _silu(acc + b2b_ref[...])                   # (TH*Wo, Cm) f32

    # ---- fused concat: ONE lane-dense full-width (TH, Wo, 2*Cm) store ------
    out_tile = jnp.concatenate(
        [x1.astype(o_ref.dtype).reshape(th, wo, cm),
         x2.astype(o_ref.dtype).reshape(th, wo, cm)], axis=-1)
    o_ref[0, :, :, :] = out_tile


# ---------------------------------------------------------------------------
# Wrapper (layout glue, BN folding, VMEM-aware tiling)
# ---------------------------------------------------------------------------
def _tile_vmem_bytes(th, wo, c, cm):
    """Rough per-grid-step VMEM footprint (bytes) of the fused kernel."""
    act = 2                                              # bf16
    in_blk = 2 * th * wo * (2 * c) * act                 # x tile (2*TH rows)
    halo_blk = wo * (2 * c) * act
    out_blk = th * wo * (2 * cm) * act
    weights = (2 * c * cm + 9 * cm * cm) * act + 3 * cm * 4
    scratch = 2 * (2 * th + 1) * wo * cm * act           # yev + yod
    # transient f32 intermediates: y_e/y_o, taps staging, acc/x1/x2, pooled,
    # shifted odd-column copy
    live = (4 * th * wo * cm + th * wo * 3 * cm + 3 * th * wo * cm
            + th * wo * c + (2 * th + 1) * wo * cm) * 4
    # inputs / outputs / weights are double-buffered by the pipeline
    return 2 * (in_blk + halo_blk + out_blk + weights) + scratch + live


def _vmem_limits():
    """(vmem_limit_bytes for the compiler, tile-selection budget)."""
    mib = 1024 * 1024
    try:
        cap = int(pltpu.get_tpu_info().vmem_capacity_bytes)
    except Exception:
        cap = 64 * mib                                   # conservative (v7x)
    limit = max(min(cap - 12 * mib, 100 * mib), 32 * mib)
    return limit, int(limit * 0.85)


def _pick_row_tile(ho, wo, c, cm, budget_bytes, min_tiles=1):
    """Largest TH dividing Ho that fits the VMEM budget, preferring at least
    `min_tiles` row tiles (keeps both v7x TensorCores busy)."""
    cands = sorted((t for t in range(1, ho + 1) if ho % t == 0), reverse=True)
    fitting = [t for t in cands if _tile_vmem_bytes(t, wo, c, cm) <= budget_bytes]
    if not fitting:
        return 1
    pref = [t for t in fitting if ho // t >= min_tiles]
    return pref[0] if pref else fitting[0]


def downsample_forward(x_nchw, params, row_tile=None):
    (w1, s1, b1, w2a, s2a, b2a, w2b, s2b, b2b) = params
    B, C, H, W = x_nchw.shape
    Cm = w1.shape[0]                  # inter_dim (PyTorch OIHW weights)
    assert H % 2 == 0 and W % 2 == 0
    Ho, Wo = H // 2, W // 2

    # NCHW -> bf16 NHWC (single layout copy), then a free reshape that pairs
    # adjacent width columns in the lane dim: [B, H, Wo, 2*C].  (For the
    # cleanest lane layout C should be a multiple of 128; smaller C works.)
    x = jnp.transpose(x_nchw.astype(_CDT), (0, 2, 3, 1)).reshape(B, H, Wo, 2 * C)

    # Fold inference BatchNorm scale into the conv weights (f32 math, then
    # bf16 for the MXU); biases stay f32 (added to the f32 accumulator).
    w1s = (jnp.transpose(w1[:, :, 0, 0]) * s1[None, :]).astype(_CDT)     # [C, Cm]
    w2as = (jnp.transpose(w2a[:, :, 0, 0]) * s2a[None, :]).astype(_CDT)  # [C, Cm]
    w2bs = (jnp.transpose(w2b, (3, 2, 1, 0)).reshape(3, 3 * Cm, Cm)
            * s2b[None, None, :]).astype(_CDT)          # [kw, kh*Cin, Cout]
    b1r = b1.reshape(1, Cm).astype(jnp.float32)
    b2ar = b2a.reshape(1, Cm).astype(jnp.float32)
    b2br = b2b.reshape(1, Cm).astype(jnp.float32)

    vmem_limit, tile_budget = _vmem_limits()
    if row_tile is None:
        min_tiles = 1 if B >= 2 else 2                  # >=2 grid steps (v7x)
        TH = _pick_row_tile(Ho, Wo, C, Cm, tile_budget, min_tiles)
    else:
        assert Ho % row_tile == 0
        TH = row_tile
    n_tiles = Ho // TH

    out = pl.pallas_call(
        _downsample_kernel,
        out_shape=jax.ShapeDtypeStruct((B, Ho, Wo, 2 * Cm), _CDT),
        grid=(B, n_tiles),
        in_specs=[
            # main x tile: 2*TH input rows per grid step
            pl.BlockSpec((1, 2 * TH, Wo, 2 * C), lambda b, i: (b, i, 0, 0)),
            # top-halo input row (row 2*TH*i - 1), read straight from x via a
            # size-1 row block; clamped at the border, masked in-kernel.
            pl.BlockSpec((1, 1, Wo, 2 * C),
                         lambda b, i: (b, jnp.maximum(2 * TH * i - 1, 0), 0, 0)),
            pl.BlockSpec((C, Cm), lambda b, i: (0, 0)),          # w1 (bf16)
            pl.BlockSpec((1, Cm), lambda b, i: (0, 0)),          # b1 (f32)
            pl.BlockSpec((C, Cm), lambda b, i: (0, 0)),          # w2a
            pl.BlockSpec((1, Cm), lambda b, i: (0, 0)),          # b2a
            pl.BlockSpec((3, 3 * Cm, Cm), lambda b, i: (0, 0, 0)),  # w2b
            pl.BlockSpec((1, Cm), lambda b, i: (0, 0)),          # b2b
        ],
        out_specs=pl.BlockSpec((1, TH, Wo, 2 * Cm), lambda b, i: (b, i, 0, 0)),
        scratch_shapes=[
            pltpu.VMEM((2 * TH + 1, Wo, Cm), _CDT),   # y, even cols (bf16)
            pltpu.VMEM((2 * TH + 1, Wo, Cm), _CDT),   # y, odd  cols (bf16)
        ],
        compiler_params=pltpu.CompilerParams(
            dimension_semantics=("parallel", "parallel"),   # v7x: 2 TCs
            vmem_limit_bytes=vmem_limit),
    )(x, x, w1s, b1r, w2as, b2ar, w2bs, b2br)

    return jnp.transpose(out, (0, 3, 1, 2))           # back to NCHW (bf16)


# ---------------------------------------------------------------------------
# Pure-JAX f32 reference (for correctness check)
# ---------------------------------------------------------------------------
def ref_forward(x, w1, s1, b1, w2a, s2a, b2a, w2b, s2b, b2b):
    dn = ('NCHW', 'OIHW', 'NCHW')

    def bn_act(z, s, b):
        z = z * s[None, :, None, None] + b[None, :, None, None]
        return z * jax.nn.sigmoid(z)

    mp = lax.reduce_window(x, -jnp.inf, lax.max, (1, 1, 2, 2), (1, 1, 2, 2), 'VALID')
    y1 = bn_act(lax.conv_general_dilated(mp, w1, (1, 1), 'VALID',
                                         dimension_numbers=dn), s1, b1)
    y2 = bn_act(lax.conv_general_dilated(x, w2a, (1, 1), 'VALID',
                                         dimension_numbers=dn), s2a, b2a)
    y2 = bn_act(lax.conv_general_dilated(y2, w2b, (2, 2), ((1, 1), (1, 1)),
                                         dimension_numbers=dn), s2b, b2b)
    return jnp.concatenate([y1, y2], axis=1)


def _fold_bn(gamma, beta, mean, var, eps=1e-5):
    scale = gamma / jnp.sqrt(var + eps)
    return scale, beta - mean * scale


if __name__ == "__main__":
    key = jax.random.PRNGKey(0)
    B, C, H, W = 2, 4, 16, 16          # in_dim = 4
    Cm = C // 2                        # inter_dim = 2
    keys = jax.random.split(key, 8)

    x = jax.random.normal(keys[0], (B, C, H, W), jnp.float32)

    # Conv weights (PyTorch OIHW layout), deterministic synthetic init.
    w1 = jax.random.normal(keys[1], (Cm, C, 1, 1), jnp.float32) * 0.5
    w2a = jax.random.normal(keys[2], (Cm, C, 1, 1), jnp.float32) * 0.5
    w2b = jax.random.normal(keys[3], (Cm, Cm, 3, 3), jnp.float32) * 0.3

    def bn_params(k):
        k1, k2, k3, k4 = jax.random.split(k, 4)
        gamma = jax.random.uniform(k1, (Cm,), jnp.float32, 0.5, 1.5)
        beta = jax.random.normal(k2, (Cm,), jnp.float32) * 0.1
        mean = jax.random.normal(k3, (Cm,), jnp.float32) * 0.1
        var = jax.random.uniform(k4, (Cm,), jnp.float32, 0.5, 1.5)
        return _fold_bn(gamma, beta, mean, var)

    s1, b1 = bn_params(keys[4])
    s2a, b2a = bn_params(keys[5])
    s2b, b2b = bn_params(keys[6])

    params = (w1, s1, b1, w2a, s2a, b2a, w2b, s2b, b2b)

    ref = ref_forward(x, *params)

    # Run both the auto-picked tile and an explicit 4-way row tiling to
    # exercise the halo / multi-tile path.  Tolerance is relaxed vs. the f32
    # reference because activations/weights are bf16 (f32 accumulation).
    for rt in (None, 2):
        out = jax.block_until_ready(downsample_forward(x, params, row_tile=rt))
        assert out.shape == (B, C, H // 2, W // 2), out.shape
        out_f32 = out.astype(jnp.float32)
        max_err = float(jnp.max(jnp.abs(out_f32 - ref)))
        assert jnp.allclose(out_f32, ref, atol=8e-2, rtol=8e-2), (rt, max_err)

    print("KERNEL_OK")
</pallas_src>

<mosaic_0001>
module attributes {stable_mosaic.version = 11 : i64} {
  func.func @_downsample_kernel(%arg0: i32, %arg1: i32, %arg2: memref<1x16x8x8xbf16, #tpu.memory_space<vmem>>, %arg3: memref<1x1x8x8xbf16, #tpu.memory_space<vmem>>, %arg4: memref<4x2xbf16, #tpu.memory_space<vmem>>, %arg5: memref<1x2xf32, #tpu.memory_space<vmem>>, %arg6: memref<4x2xbf16, #tpu.memory_space<vmem>>, %arg7: memref<1x2xf32, #tpu.memory_space<vmem>>, %arg8: memref<3x6x2xbf16, #tpu.memory_space<vmem>>, %arg9: memref<1x2xf32, #tpu.memory_space<vmem>>, %arg10: memref<1x8x8x4xbf16, #tpu.memory_space<vmem>>, %arg11: memref<17x8x2xbf16, #tpu.memory_space<vmem>>, %arg12: memref<17x8x2xbf16, #tpu.memory_space<vmem>>) attributes {dimension_semantics = [#tpu.dimension_semantics<parallel>, #tpu.dimension_semantics<parallel>], iteration_bounds = array<i64: 2, 1>, scalar_prefetch = 0 : i64, scratch_operands = 2 : i64, tpu.core_type = #tpu.core_type<tc>, window_params = [{transform_indices = @transform_0, window_bounds = array<i64: 1, 16, 8, 8>}, {transform_indices = @transform_1, window_bounds = array<i64: 1, 1, 8, 8>}, {pipeline_mode = #tpu.pipeline_mode<synchronous>, transform_indices = @transform_2, window_bounds = array<i64: 4, 2>}, {pipeline_mode = #tpu.pipeline_mode<synchronous>, transform_indices = @transform_3, window_bounds = array<i64: 1, 2>}, {pipeline_mode = #tpu.pipeline_mode<synchronous>, transform_indices = @transform_4, window_bounds = array<i64: 4, 2>}, {pipeline_mode = #tpu.pipeline_mode<synchronous>, transform_indices = @transform_5, window_bounds = array<i64: 1, 2>}, {pipeline_mode = #tpu.pipeline_mode<synchronous>, transform_indices = @transform_6, window_bounds = array<i64: 3, 6, 2>}, {pipeline_mode = #tpu.pipeline_mode<synchronous>, transform_indices = @transform_7, window_bounds = array<i64: 1, 2>}, {transform_indices = @transform_8, window_bounds = array<i64: 1, 8, 8, 4>}]} {
    %c0 = arith.constant 0 : index
    %c0_0 = arith.constant 0 : index
    %c0_1 = arith.constant 0 : index
    %c0_2 = arith.constant 0 : index
    %0 = vector.load %arg2[%c0, %c0_0, %c0_1, %c0_2] : memref<1x16x8x8xbf16, #tpu.memory_space<vmem>>, vector<1x16x8x4xbf16>
    %1 = vector.shape_cast %0 : vector<1x16x8x4xbf16> to vector<16x8x4xbf16>
    %c0_3 = arith.constant 0 : index
    %c0_4 = arith.constant 0 : index
    %c0_5 = arith.constant 0 : index
    %c4 = arith.constant 4 : index
    %2 = vector.load %arg2[%c0_3, %c0_4, %c0_5, %c4] : memref<1x16x8x8xbf16, #tpu.memory_space<vmem>>, vector<1x16x8x4xbf16>
    %3 = vector.shape_cast %2 : vector<1x16x8x4xbf16> to vector<16x8x4xbf16>
    %4 = arith.maximumf %1, %3 : vector<16x8x4xbf16>
    %5 = vector.shape_cast %4 : vector<16x8x4xbf16> to vector<8x2x8x4xbf16>
    %6 = vector.extract_strided_slice %5 {offsets = [0, 0, 0, 0], sizes = [8, 1, 8, 4], strides = [1, 1, 1, 1]} : vector<8x2x8x4xbf16> to vector<8x1x8x4xbf16>
    %7 = vector.shape_cast %6 : vector<8x1x8x4xbf16> to vector<8x8x4xbf16>
    %8 = vector.extract_strided_slice %5 {offsets = [0, 1, 0, 0], sizes = [8, 1, 8, 4], strides = [1, 1, 1, 1]} : vector<8x2x8x4xbf16> to vector<8x1x8x4xbf16>
    %9 = vector.shape_cast %8 : vector<8x1x8x4xbf16> to vector<8x8x4xbf16>
    %10 = arith.maximumf %7, %9 : vector<8x8x4xbf16>
    %11 = vector.shape_cast %10 : vector<8x8x4xbf16> to vector<64x4xbf16>
    %c0_6 = arith.constant 0 : index
    %c0_7 = arith.constant 0 : index
    %12 = vector.load %arg4[%c0_6, %c0_7] : memref<4x2xbf16, #tpu.memory_space<vmem>>, vector<4x2xbf16>
    %cst = arith.constant dense<0.000000e+00> : vector<64x2xf32>
    %13 = tpu.matmul %11, %12, %cst {dimension_numbers = #tpu.dot_dimension_numbers<[1], [0], [0], [1], [0, 0, 1, 1], [], []>} : vector<64x4xbf16>, vector<4x2xbf16>, vector<64x2xf32> -> vector<64x2xf32>
    %c0_8 = arith.constant 0 : index
    %c0_9 = arith.constant 0 : index
    %14 = vector.load %arg5[%c0_8, %c0_9] : memref<1x2xf32, #tpu.memory_space<vmem>>, vector<1x2xf32>
    %15 = vector.broadcast %14 : vector<1x2xf32> to vector<64x2xf32>
    %16 = arith.addf %13, %15 : vector<64x2xf32>
    %cst_10 = arith.constant 0.000000e+00 : f32
    %17 = vector.broadcast %cst_10 : f32 to vector<64x2xf32>
    %18 = arith.subf %17, %16 : vector<64x2xf32>
    %19 = math.exp %18 : vector<64x2xf32>
    %cst_11 = arith.constant 1.000000e+00 : f32
    %20 = vector.broadcast %cst_11 : f32 to vector<64x2xf32>
    %21 = arith.addf %20, %19 : vector<64x2xf32>
    %cst_12 = arith.constant 1.000000e+00 : f32
    %22 = vector.broadcast %cst_12 : f32 to vector<64x2xf32>
    %23 = arith.divf %22, %21 : vector<64x2xf32>
    %24 = arith.mulf %16, %23 : vector<64x2xf32>
    %c0_13 = arith.constant 0 : index
    %c0_14 = arith.constant 0 : index
    %25 = vector.load %arg6[%c0_13, %c0_14] : memref<4x2xbf16, #tpu.memory_space<vmem>>, vector<4x2xbf16>
    %c0_15 = arith.constant 0 : index
    %c0_16 = arith.constant 0 : index
    %26 = vector.load %arg7[%c0_15, %c0_16] : memref<1x2xf32, #tpu.memory_space<vmem>>, vector<1x2xf32>
    %27 = vector.shape_cast %1 : vector<16x8x4xbf16> to vector<128x4xbf16>
    %cst_17 = arith.constant dense<0.000000e+00> : vector<128x2xf32>
    %28 = tpu.matmul %27, %25, %cst_17 {dimension_numbers = #tpu.dot_dimension_numbers<[1], [0], [0], [1], [0, 0, 1, 1], [], []>} : vector<128x4xbf16>, vector<4x2xbf16>, vector<128x2xf32> -> vector<128x2xf32>
    %29 = vector.broadcast %26 : vector<1x2xf32> to vector<128x2xf32>
    %30 = arith.addf %28, %29 : vector<128x2xf32>
    %cst_18 = arith.constant 0.000000e+00 : f32
    %31 = vector.broadcast %cst_18 : f32 to vector<128x2xf32>
    %32 = arith.subf %31, %30 : vector<128x2xf32>
    %33 = math.exp %32 : vector<128x2xf32>
    %cst_19 = arith.constant 1.000000e+00 : f32
    %34 = vector.broadcast %cst_19 : f32 to vector<128x2xf32>
    %35 = arith.addf %34, %33 : vector<128x2xf32>
    %cst_20 = arith.constant 1.000000e+00 : f32
    %36 = vector.broadcast %cst_20 : f32 to vector<128x2xf32>
    %37 = arith.divf %36, %35 : vector<128x2xf32>
    %38 = arith.mulf %30, %37 : vector<128x2xf32>
    %39 = vector.shape_cast %3 : vector<16x8x4xbf16> to vector<128x4xbf16>
    %cst_21 = arith.constant dense<0.000000e+00> : vector<128x2xf32>
    %40 = tpu.matmul %39, %25, %cst_21 {dimension_numbers = #tpu.dot_dimension_numbers<[1], [0], [0], [1], [0, 0, 1, 1], [], []>} : vector<128x4xbf16>, vector<4x2xbf16>, vector<128x2xf32> -> vector<128x2xf32>
    %41 = vector.broadcast %26 : vector<1x2xf32> to vector<128x2xf32>
    %42 = arith.addf %40, %41 : vector<128x2xf32>
    %cst_22 = arith.constant 0.000000e+00 : f32
    %43 = vector.broadcast %cst_22 : f32 to vector<128x2xf32>
    %44 = arith.subf %43, %42 : vector<128x2xf32>
    %45 = math.exp %44 : vector<128x2xf32>
    %cst_23 = arith.constant 1.000000e+00 : f32
    %46 = vector.broadcast %cst_23 : f32 to vector<128x2xf32>
    %47 = arith.addf %46, %45 : vector<128x2xf32>
    %cst_24 = arith.constant 1.000000e+00 : f32
    %48 = vector.broadcast %cst_24 : f32 to vector<128x2xf32>
    %49 = arith.divf %48, %47 : vector<128x2xf32>
    %50 = arith.mulf %42, %49 : vector<128x2xf32>
    %c0_i32 = arith.constant 0 : i32
    %51 = arith.cmpi sgt, %arg1, %c0_i32 : i32
    %52 = arith.extui %51 : i1 to i32
    %53 = arith.sitofp %52 : i32 to f32
    %c0_25 = arith.constant 0 : index
    %c0_26 = arith.constant 0 : index
    %c0_27 = arith.constant 0 : index
    %c0_28 = arith.constant 0 : index
    %54 = vector.load %arg3[%c0_25, %c0_26, %c0_27, %c0_28] : memref<1x1x8x8xbf16, #tpu.memory_space<vmem>>, vector<1x1x8x8xbf16>
    %55 = vector.shape_cast %54 : vector<1x1x8x8xbf16> to vector<8x8xbf16>
    %56 = vector.extract_strided_slice %55 {offsets = [0, 0], sizes = [8, 4], strides = [1, 1]} : vector<8x8xbf16> to vector<8x4xbf16>
    %cst_29 = arith.constant dense<0.000000e+00> : vector<8x2xf32>
    %57 = tpu.matmul %56, %25, %cst_29 {dimension_numbers = #tpu.dot_dimension_numbers<[1], [0], [0], [1], [0, 0, 1, 1], [], []>} : vector<8x4xbf16>, vector<4x2xbf16>, vector<8x2xf32> -> vector<8x2xf32>
    %58 = vector.broadcast %26 : vector<1x2xf32> to vector<8x2xf32>
    %59 = arith.addf %57, %58 : vector<8x2xf32>
    %cst_30 = arith.constant 0.000000e+00 : f32
    %60 = vector.broadcast %cst_30 : f32 to vector<8x2xf32>
    %61 = arith.subf %60, %59 : vector<8x2xf32>
    %62 = math.exp %61 : vector<8x2xf32>
    %cst_31 = arith.constant 1.000000e+00 : f32
    %63 = vector.broadcast %cst_31 : f32 to vector<8x2xf32>
    %64 = arith.addf %63, %62 : vector<8x2xf32>
    %cst_32 = arith.constant 1.000000e+00 : f32
    %65 = vector.broadcast %cst_32 : f32 to vector<8x2xf32>
    %66 = arith.divf %65, %64 : vector<8x2xf32>
    %67 = arith.mulf %59, %66 : vector<8x2xf32>
    %68 = vector.broadcast %53 : f32 to vector<8x2xf32>
    %69 = arith.mulf %67, %68 : vector<8x2xf32>
    %70 = vector.extract_strided_slice %55 {offsets = [0, 4], sizes = [8, 4], strides = [1, 1]} : vector<8x8xbf16> to vector<8x4xbf16>
    %cst_33 = arith.constant dense<0.000000e+00> : vector<8x2xf32>
    %71 = tpu.matmul %70, %25, %cst_33 {dimension_numbers = #tpu.dot_dimension_numbers<[1], [0], [0], [1], [0, 0, 1, 1], [], []>} : vector<8x4xbf16>, vector<4x2xbf16>, vector<8x2xf32> -> vector<8x2xf32>
    %72 = vector.broadcast %26 : vector<1x2xf32> to vector<8x2xf32>
    %73 = arith.addf %71, %72 : vector<8x2xf32>
    %cst_34 = arith.constant 0.000000e+00 : f32
    %74 = vector.broadcast %cst_34 : f32 to vector<8x2xf32>
    %75 = arith.subf %74, %73 : vector<8x2xf32>
    %76 = math.exp %75 : vector<8x2xf32>
    %cst_35 = arith.constant 1.000000e+00 : f32
    %77 = vector.broadcast %cst_35 : f32 to vector<8x2xf32>
    %78 = arith.addf %77, %76 : vector<8x2xf32>
    %cst_36 = arith.constant 1.000000e+00 : f32
    %79 = vector.broadcast %cst_36 : f32 to vector<8x2xf32>
    %80 = arith.divf %79, %78 : vector<8x2xf32>
    %81 = arith.mulf %73, %80 : vector<8x2xf32>
    %82 = vector.broadcast %53 : f32 to vector<8x2xf32>
    %83 = arith.mulf %81, %82 : vector<8x2xf32>
    %84 = arith.truncf %69 : vector<8x2xf32> to vector<8x2xbf16>
    %c0_37 = arith.constant 0 : index
    %c0_38 = arith.constant 0 : index
    %c0_39 = arith.constant 0 : index
    %85 = vector.load %arg11[%c0_37, %c0_38, %c0_39] : memref<17x8x2xbf16, #tpu.memory_space<vmem>>, vector<1x8x2xbf16>
    %86 = vector.shape_cast %85 : vector<1x8x2xbf16> to vector<8x2xbf16>
    %87 = vector.shape_cast %84 : vector<8x2xbf16> to vector<1x8x2xbf16>
    tpu.vector_store %arg11[%c0_37, %c0_38, %c0_39], %87 {strides = array<i32>} : memref<17x8x2xbf16, #tpu.memory_space<vmem>>, vector<1x8x2xbf16>,
    %88 = arith.truncf %83 : vector<8x2xf32> to vector<8x2xbf16>
    %c0_40 = arith.constant 0 : index
    %c0_41 = arith.constant 0 : index
    %c0_42 = arith.constant 0 : index
    %89 = vector.load %arg12[%c0_40, %c0_41, %c0_42] : memref<17x8x2xbf16, #tpu.memory_space<vmem>>, vector<1x8x2xbf16>
    %90 = vector.shape_cast %89 : vector<1x8x2xbf16> to vector<8x2xbf16>
    %91 = vector.shape_cast %88 : vector<8x2xbf16> to vector<1x8x2xbf16>
    tpu.vector_store %arg12[%c0_40, %c0_41, %c0_42], %91 {strides = array<i32>} : memref<17x8x2xbf16, #tpu.memory_space<vmem>>, vector<1x8x2xbf16>,
    %92 = arith.truncf %38 : vector<128x2xf32> to vector<128x2xbf16>
    %93 = vector.shape_cast %92 : vector<128x2xbf16> to vector<16x8x2xbf16>
    %c1 = arith.constant 1 : index
    %c0_43 = arith.constant 0 : index
    %c0_44 = arith.constant 0 : index
    %94 = vector.load %arg11[%c1, %c0_43, %c0_44] : memref<17x8x2xbf16, #tpu.memory_space<vmem>>, vector<16x8x2xbf16>
    tpu.vector_store %arg11[%c1, %c0_43, %c0_44], %93 {strides = array<i32>} : memref<17x8x2xbf16, #tpu.memory_space<vmem>>, vector<16x8x2xbf16>,
    %95 = arith.truncf %50 : vector<128x2xf32> to vector<128x2xbf16>
    %96 = vector.shape_cast %95 : vector<128x2xbf16> to vector<16x8x2xbf16>
    %c1_45 = arith.constant 1 : index
    %c0_46 = arith.constant 0 : index
    %c0_47 = arith.constant 0 : index
    %97 = vector.load %arg12[%c1_45, %c0_46, %c0_47] : memref<17x8x2xbf16, #tpu.memory_space<vmem>>, vector<16x8x2xbf16>
    tpu.vector_store %arg12[%c1_45, %c0_46, %c0_47], %96 {strides = array<i32>} : memref<17x8x2xbf16, #tpu.memory_space<vmem>>, vector<16x8x2xbf16>,
    %c0_48 = arith.constant 0 : index
    %c0_49 = arith.constant 0 : index
    %c0_50 = arith.constant 0 : index
    %98 = vector.load %arg11[%c0_48, %c0_49, %c0_50] : memref<17x8x2xbf16, #tpu.memory_space<vmem>>, vector<17x8x2xbf16>
    %c0_51 = arith.constant 0 : index
    %c0_52 = arith.constant 0 : index
    %c0_53 = arith.constant 0 : index
    %99 = vector.load %arg12[%c0_51, %c0_52, %c0_53] : memref<17x8x2xbf16, #tpu.memory_space<vmem>>, vector<17x8x2xbf16>
    %100 = arith.extf %99 : vector<17x8x2xbf16> to vector<17x8x2xf32>
    %c1_i32 = arith.constant 1 : i32
    %101 = tpu.dynamic_rotate %100 by %c1_i32 dim 1 : vector<17x8x2xf32>, i32 -> vector<17x8x2xf32>
    %102 = tpu.iota {dimensions = array<i32: 1>} : vector<17x8x2xi32>
    %c0_i32_54 = arith.constant 0 : i32
    %103 = vector.broadcast %c0_i32_54 : i32 to vector<17x8x2xi32>
    %104 = arith.cmpi eq, %102, %103 : vector<17x8x2xi32>
    %cst_55 = arith.constant 0.000000e+00 : f32
    %105 = vector.broadcast %cst_55 : f32 to vector<17x8x2xf32>
    %106 = arith.select %104, %105, %101 : vector<17x8x2xi1>, vector<17x8x2xf32>
    %107 = arith.truncf %106 : vector<17x8x2xf32> to vector<17x8x2xbf16>
    %108 = vector.extract_strided_slice %107 {offsets = [0, 0, 0], sizes = [16, 8, 2], strides = [1, 1, 1]} : vector<17x8x2xbf16> to vector<16x8x2xbf16>
    %109 = vector.shape_cast %108 : vector<16x8x2xbf16> to vector<8x2x8x2xbf16>
    %110 = vector.extract_strided_slice %107 {offsets = [1, 0, 0], sizes = [16, 8, 2], strides = [1, 1, 1]} : vector<17x8x2xbf16> to vector<16x8x2xbf16>
    %111 = vector.shape_cast %110 : vector<16x8x2xbf16> to vector<8x2x8x2xbf16>
    %112 = vector.extract_strided_slice %109 {offsets = [0, 0, 0, 0], sizes = [8, 1, 8, 2], strides = [1, 1, 1, 1]} : vector<8x2x8x2xbf16> to vector<8x1x8x2xbf16>
    %113 = vector.shape_cast %112 : vector<8x1x8x2xbf16> to vector<8x8x2xbf16>
    %114 = vector.extract_strided_slice %109 {offsets = [0, 1, 0, 0], sizes = [8, 1, 8, 2], strides = [1, 1, 1, 1]} : vector<8x2x8x2xbf16> to vector<8x1x8x2xbf16>
    %115 = vector.shape_cast %114 : vector<8x1x8x2xbf16> to vector<8x8x2xbf16>
    %116 = vector.extract_strided_slice %111 {offsets = [0, 1, 0, 0], sizes = [8, 1, 8, 2], strides = [1, 1, 1, 1]} : vector<8x2x8x2xbf16> to vector<8x1x8x2xbf16>
    %117 = vector.shape_cast %116 : vector<8x1x8x2xbf16> to vector<8x8x2xbf16>
    %118 = tpu.concatenate %113, %115, %117 in 2 : vector<8x8x2xbf16>, vector<8x8x2xbf16>, vector<8x8x2xbf16> -> vector<8x8x6xbf16>
    %119 = vector.shape_cast %118 : vector<8x8x6xbf16> to vector<64x6xbf16>
    %c0_56 = arith.constant 0 : index
    %c0_57 = arith.constant 0 : index
    %c0_58 = arith.constant 0 : index
    %120 = vector.load %arg8[%c0_56, %c0_57, %c0_58] : memref<3x6x2xbf16, #tpu.memory_space<vmem>>, vector<1x6x2xbf16>
    %121 = vector.shape_cast %120 : vector<1x6x2xbf16> to vector<6x2xbf16>
    %cst_59 = arith.constant dense<0.000000e+00> : vector<64x2xf32>
    %122 = tpu.matmul %119, %121, %cst_59 {dimension_numbers = #tpu.dot_dimension_numbers<[1], [0], [0], [1], [0, 0, 1, 1], [], []>} : vector<64x6xbf16>, vector<6x2xbf16>, vector<64x2xf32> -> vector<64x2xf32>
    %123 = vector.extract_strided_slice %98 {offsets = [0, 0, 0], sizes = [16, 8, 2], strides = [1, 1, 1]} : vector<17x8x2xbf16> to vector<16x8x2xbf16>
    %124 = vector.shape_cast %123 : vector<16x8x2xbf16> to vector<8x2x8x2xbf16>
    %125 = vector.extract_strided_slice %98 {offsets = [1, 0, 0], sizes = [16, 8, 2], strides = [1, 1, 1]} : vector<17x8x2xbf16> to vector<16x8x2xbf16>
    %126 = vector.shape_cast %125 : vector<16x8x2xbf16> to vector<8x2x8x2xbf16>
    %127 = vector.extract_strided_slice %124 {offsets = [0, 0, 0, 0], sizes = [8, 1, 8, 2], strides = [1, 1, 1, 1]} : vector<8x2x8x2xbf16> to vector<8x1x8x2xbf16>
    %128 = vector.shape_cast %127 : vector<8x1x8x2xbf16> to vector<8x8x2xbf16>
    %129 = vector.extract_strided_slice %124 {offsets = [0, 1, 0, 0], sizes = [8, 1, 8, 2], strides = [1, 1, 1, 1]} : vector<8x2x8x2xbf16> to vector<8x1x8x2xbf16>
    %130 = vector.shape_cast %129 : vector<8x1x8x2xbf16> to vector<8x8x2xbf16>
    %131 = vector.extract_strided_slice %126 {offsets = [0, 1, 0, 0], sizes = [8, 1, 8, 2], strides = [1, 1, 1, 1]} : vector<8x2x8x2xbf16> to vector<8x1x8x2xbf16>
    %132 = vector.shape_cast %131 : vector<8x1x8x2xbf16> to vector<8x8x2xbf16>
    %133 = tpu.concatenate %128, %130, %132 in 2 : vector<8x8x2xbf16>, vector<8x8x2xbf16>, vector<8x8x2xbf16> -> vector<8x8x6xbf16>
    %134 = vector.shape_cast %133 : vector<8x8x6xbf16> to vector<64x6xbf16>
    %c1_60 = arith.constant 1 : index
    %c0_61 = arith.constant 0 : index
    %c0_62 = arith.constant 0 : index
    %135 = vector.load %arg8[%c1_60, %c0_61, %c0_62] : memref<3x6x2xbf16, #tpu.memory_space<vmem>>, vector<1x6x2xbf16>
    %136 = vector.shape_cast %135 : vector<1x6x2xbf16> to vector<6x2xbf16>
    %cst_63 = arith.constant dense<0.000000e+00> : vector<64x2xf32>
    %137 = tpu.matmul %134, %136, %cst_63 {dimension_numbers = #tpu.dot_dimension_numbers<[1], [0], [0], [1], [0, 0, 1, 1], [], []>} : vector<64x6xbf16>, vector<6x2xbf16>, vector<64x2xf32> -> vector<64x2xf32>
    %138 = arith.addf %122, %137 : vector<64x2xf32>
    %139 = vector.extract_strided_slice %99 {offsets = [0, 0, 0], sizes = [16, 8, 2], strides = [1, 1, 1]} : vector<17x8x2xbf16> to vector<16x8x2xbf16>
    %140 = vector.shape_cast %139 : vector<16x8x2xbf16> to vector<8x2x8x2xbf16>
    %141 = vector.extract_strided_slice %99 {offsets = [1, 0, 0], sizes = [16, 8, 2], strides = [1, 1, 1]} : vector<17x8x2xbf16> to vector<16x8x2xbf16>
    %142 = vector.shape_cast %141 : vector<16x8x2xbf16> to vector<8x2x8x2xbf16>
    %143 = vector.extract_strided_slice %140 {offsets = [0, 0, 0, 0], sizes = [8, 1, 8, 2], strides = [1, 1, 1, 1]} : vector<8x2x8x2xbf16> to vector<8x1x8x2xbf16>
    %144 = vector.shape_cast %143 : vector<8x1x8x2xbf16> to vector<8x8x2xbf16>
    %145 = vector.extract_strided_slice %140 {offsets = [0, 1, 0, 0], sizes = [8, 1, 8, 2], strides = [1, 1, 1, 1]} : vector<8x2x8x2xbf16> to vector<8x1x8x2xbf16>
    %146 = vector.shape_cast %145 : vector<8x1x8x2xbf16> to vector<8x8x2xbf16>
    %147 = vector.extract_strided_slice %142 {offsets = [0, 1, 0, 0], sizes = [8, 1, 8, 2], strides = [1, 1, 1, 1]} : vector<8x2x8x2xbf16> to vector<8x1x8x2xbf16>
    %148 = vector.shape_cast %147 : vector<8x1x8x2xbf16> to vector<8x8x2xbf16>
    %149 = tpu.concatenate %144, %146, %148 in 2 : vector<8x8x2xbf16>, vector<8x8x2xbf16>, vector<8x8x2xbf16> -> vector<8x8x6xbf16>
    %150 = vector.shape_cast %149 : vector<8x8x6xbf16> to vector<64x6xbf16>
    %c2 = arith.constant 2 : index
    %c0_64 = arith.constant 0 : index
    %c0_65 = arith.constant 0 : index
    %151 = vector.load %arg8[%c2, %c0_64, %c0_65] : memref<3x6x2xbf16, #tpu.memory_space<vmem>>, vector<1x6x2xbf16>
    %152 = vector.shape_cast %151 : vector<1x6x2xbf16> to vector<6x2xbf16>
    %cst_66 = arith.constant dense<0.000000e+00> : vector<64x2xf32>
    %153 = tpu.matmul %150, %152, %cst_66 {dimension_numbers = #tpu.dot_dimension_numbers<[1], [0], [0], [1], [0, 0, 1, 1], [], []>} : vector<64x6xbf16>, vector<6x2xbf16>, vector<64x2xf32> -> vector<64x2xf32>
    %154 = arith.addf %138, %153 : vector<64x2xf32>
    %c0_67 = arith.constant 0 : index
    %c0_68 = arith.constant 0 : index
    %155 = vector.load %arg9[%c0_67, %c0_68] : memref<1x2xf32, #tpu.memory_space<vmem>>, vector<1x2xf32>
    %156 = vector.broadcast %155 : vector<1x2xf32> to vector<64x2xf32>
    %157 = arith.addf %154, %156 : vector<64x2xf32>
    %cst_69 = arith.constant 0.000000e+00 : f32
    %158 = vector.broadcast %cst_69 : f32 to vector<64x2xf32>
    %159 = arith.subf %158, %157 : vector<64x2xf32>
    %160 = math.exp %159 : vector<64x2xf32>
    %cst_70 = arith.constant 1.000000e+00 : f32
    %161 = vector.broadcast %cst_70 : f32 to vector<64x2xf32>
    %162 = arith.addf %161, %160 : vector<64x2xf32>
    %cst_71 = arith.constant 1.000000e+00 : f32
    %163 = vector.broadcast %cst_71 : f32 to vector<64x2xf32>
    %164 = arith.divf %163, %162 : vector<64x2xf32>
    %165 = arith.mulf %157, %164 : vector<64x2xf32>
    %166 = arith.truncf %24 : vector<64x2xf32> to vector<64x2xbf16>
    %167 = vector.shape_cast %166 : vector<64x2xbf16> to vector<8x8x2xbf16>
    %168 = arith.truncf %165 : vector<64x2xf32> to vector<64x2xbf16>
    %169 = vector.shape_cast %168 : vector<64x2xbf16> to vector<8x8x2xbf16>
    %170 = tpu.concatenate %167, %169 in 2 : vector<8x8x2xbf16>, vector<8x8x2xbf16> -> vector<8x8x4xbf16>
    %c0_72 = arith.constant 0 : index
    %c0_73 = arith.constant 0 : index
    %c0_74 = arith.constant 0 : index
    %c0_75 = arith.constant 0 : index
    %171 = vector.load %arg10[%c0_72, %c0_73, %c0_74, %c0_75] : memref<1x8x8x4xbf16, #tpu.memory_space<vmem>>, vector<1x8x8x4xbf16>
    %172 = vector.shape_cast %171 : vector<1x8x8x4xbf16> to vector<8x8x4xbf16>
    %173 = vector.shape_cast %170 : vector<8x8x4xbf16> to vector<1x8x8x4xbf16>
    tpu.vector_store %arg10[%c0_72, %c0_73, %c0_74, %c0_75], %173 {strides = array<i32>} : memref<1x8x8x4xbf16, #tpu.memory_space<vmem>>, vector<1x8x8x4xbf16>,
    return
  }
  func.func @transform_0(%arg0: i32, %arg1: i32) -> (i32, i32, i32, i32) {
    %c0_i32 = arith.constant 0 : i32
    %c0_i32_0 = arith.constant 0 : i32
    %c0_i32_1 = arith.constant 0 : i32
    return %arg0, %arg1, %c0_i32, %c0_i32_0 : i32, i32, i32, i32
  }
  func.func @transform_1(%arg0: i32, %arg1: i32) -> (i32, i32, i32, i32) {
    %c16_i32 = arith.constant 16 : i32
    %0 = arith.muli %c16_i32, %arg1 : i32
    %c1_i32 = arith.constant 1 : i32
    %1 = arith.subi %0, %c1_i32 : i32
    %c0_i32 = arith.constant 0 : i32
    %2 = arith.maxsi %1, %c0_i32 : i32
    %c0_i32_0 = arith.constant 0 : i32
    %c0_i32_1 = arith.constant 0 : i32
    %c0_i32_2 = arith.constant 0 : i32
    return %arg0, %2, %c0_i32_0, %c0_i32_1 : i32, i32, i32, i32
  }
  func.func @transform_2(%arg0: i32, %arg1: i32) -> (i32, i32) {
    %c0_i32 = arith.constant 0 : i32
    %c0_i32_0 = arith.constant 0 : i32
    %c0_i32_1 = arith.constant 0 : i32
    return %c0_i32, %c0_i32_0 : i32, i32
  }
  func.func @transform_3(%arg0: i32, %arg1: i32) -> (i32, i32) {
    %c0_i32 = arith.constant 0 : i32
    %c0_i32_0 = arith.constant 0 : i32
    %c0_i32_1 = arith.constant 0 : i32
    return %c0_i32, %c0_i32_0 : i32, i32
  }
  func.func @transform_4(%arg0: i32, %arg1: i32) -> (i32, i32) {
    %c0_i32 = arith.constant 0 : i32
    %c0_i32_0 = arith.constant 0 : i32
    %c0_i32_1 = arith.constant 0 : i32
    return %c0_i32, %c0_i32_0 : i32, i32
  }
  func.func @transform_5(%arg0: i32, %arg1: i32) -> (i32, i32) {
    %c0_i32 = arith.constant 0 : i32
    %c0_i32_0 = arith.constant 0 : i32
    %c0_i32_1 = arith.constant 0 : i32
    return %c0_i32, %c0_i32_0 : i32, i32
  }
  func.func @transform_6(%arg0: i32, %arg1: i32) -> (i32, i32, i32) {
    %c0_i32 = arith.constant 0 : i32
    %c0_i32_0 = arith.constant 0 : i32
    %c0_i32_1 = arith.constant 0 : i32
    %c0_i32_2 = arith.constant 0 : i32
    return %c0_i32, %c0_i32_0, %c0_i32_1 : i32, i32, i32
  }
  func.func @transform_7(%arg0: i32, %arg1: i32) -> (i32, i32) {
    %c0_i32 = arith.constant 0 : i32
    %c0_i32_0 = arith.constant 0 : i32
    %c0_i32_1 = arith.constant 0 : i32
    return %c0_i32, %c0_i32_0 : i32, i32
  }
  func.func @transform_8(%arg0: i32, %arg1: i32) -> (i32, i32, i32, i32) {
    %c0_i32 = arith.constant 0 : i32
    %c0_i32_0 = arith.constant 0 : i32
    %c0_i32_1 = arith.constant 0 : i32
    return %arg0, %arg1, %c0_i32, %c0_i32_0 : i32, i32, i32, i32
  }
}

</mosaic_0001>

<llo_original>
// kernel: tpu_custom_call.1
$region0: #{tpu_custom_call.1}
  #allocation0 [shape = 'u32[]', space=smem, size = 0x4, offset = 0x4, fixed_abs, tag = 'smem constant byte address 0x4 - core index']
  #allocation1 [shape = 'u32[144,128]{1,0:T(1,128)}', space=vmem, size = 0x12000, scoped, tag = 'internal scratch']
  #allocation2 [shape = 'bf16[17,8,2]{2,1,0:T(8,128)(2,1)}', space=vmem, size = 0x8800, scoped, tag = 'scratch operand']
  #allocation3 [shape = 'bf16[17,8,2]{2,1,0:T(8,128)(2,1)}', space=vmem, size = 0x8800, scoped, tag = 'scratch operand']
  %s0 = inlined_call_operand.vmem [shape: bf16[2,16,8,8], index: 0, kind: input, shape index: {}]
  %s1 = inlined_call_operand.vmem [shape: bf16[2,16,8,8], index: 1, kind: input, shape index: {}]
  %s2 = inlined_call_operand.vmem [shape: bf16[4,2], index: 2, kind: input, shape index: {}]
  %s3 = inlined_call_operand.vmem [shape: f32[1,2], index: 3, kind: input, shape index: {}]
  %s4 = inlined_call_operand.vmem [shape: bf16[4,2], index: 4, kind: input, shape index: {}]
  %s5 = inlined_call_operand.vmem [shape: f32[1,2], index: 5, kind: input, shape index: {}]
  %s6 = inlined_call_operand.vmem [shape: bf16[3,6,2], index: 6, kind: input, shape index: {}]
  %s7 = inlined_call_operand.vmem [shape: f32[1,2], index: 7, kind: input, shape index: {}]
  %s8 = inlined_call_operand.vmem [shape: bf16[2,8,8,4], index: 8, kind: output, shape index: {}]
  %s9 = sld [smem:[#allocation0]]
  $region65: #{tpu_custom_call.1} parent=0
    _
  %s11 = ssub.s32 1, %s9
  %s12 = scalar_select 0, %s11, %s9
  loop: start=0, step=1, limit=4
  $region2: #{tpu_custom_call.1} parent=0 // loop_pre_header
    _
  $region3: #{tpu_custom_call.1} parent=0 // loop_header
    %s14 = sphi 0, %s18
    %p15 = scmp.ge.s32.totalorder %s14, 4
    %s21 = sphi 0, %s33
    %s22 = sphi 0, %s29
    %s23 = sphi 0, %s21
    %s24 = sphi 0, %s22
    %s25 = sphi 0, %s23
    %s26 = sphi 0, %s24
    %s38 = sphi 0, %s40
    %s41 = sphi 0, %s38
    %s42 = sphi 0, %s41
    %s58 = sphi 0, %s42
    %s74 = sphi 0, %s76
    %s77 = sphi 0, %s74
    %s78 = sphi 0, %s77
    %s94 = sphi 0, %s78
    %s98 = sphi 0, %s98
    %s100 = sphi 0, %s98
    %s101 = sphi 0, %s100
    %s115 = sphi 0, %s101
    %s119 = sphi 0, %s119
    %s121 = sphi 0, %s119
    %s122 = sphi 0, %s121
    %s136 = sphi 0, %s122
    %s140 = sphi 0, %s140
    %s142 = sphi 0, %s140
    %s143 = sphi 0, %s142
    %s157 = sphi 0, %s143
    %s161 = sphi 0, %s161
    %s163 = sphi 0, %s161
    %s164 = sphi 0, %s163
    %s178 = sphi 0, %s164
    %s182 = sphi 0, %s182
    %s184 = sphi 0, %s182
    %s185 = sphi 0, %s184
    %s199 = sphi 0, %s185
    %s203 = sphi 0, %s203
    %s205 = sphi 0, %s203
    %s206 = sphi 0, %s205
    %s220 = sphi 0, %s206
    %s228 = sphi 0, %s230
    %s231 = sphi 0, %s228
    %s232 = sphi 0, %s231
    %s248 = sphi 0, %s232
  $region4: #{tpu_custom_call.1} parent=0 // loop_header_branch
    %17 = sbr.rel (%p15) target = $region8
  $region5: #{tpu_custom_call.1} parent=0 // loop_body
    %s19 = ssub.s32 %s14, 1
    %s20 = ssub.s32 %s14, 2
    %s27 = sadd.s32 1, %s22
    %p28 = scmp.ge.s32.totalorder %s27, 1
    %s29 = scalar_select %p28, 0, %s27
    %s30 = sadd.s32 1, %s21
    %s31 = scalar_select %p28, %s30, %s21
    %p32 = scmp.ge.s32.totalorder %s31, 2
    %s33 = scalar_select %p32, 0, %s31
    %s34 = ssub.s32 %s21, %s33
    %s35 = ssub.s32 %s22, %s29
    %s36 = sor.u32 %s34, %s35
    %p37 = scmp.eq.s32.totalorder %s36, 0
    %s39 = sadd.s32 %s38, 1
    %s40 = scalar_select %p37, %s38, %s39
    %p43 = pneg %p37
    %p44 = scmp.eq.s32.totalorder %s14, 1
    %p45 = por %p43, %p44
    %p46 = scmp.ne.s32.totalorder %s38, %s41
    %p47 = scmp.eq.s32.totalorder %s14, 0
    %p48 = por %p46, %p47
    %p49 = scmp.ne.s32.totalorder %s38, %s41
    %p50 = scmp.eq.s32.totalorder %s19, 1
    %p51 = por %p49, %p50
    %p52 = scmp.ne.s32.totalorder %s41, %s42
    %p53 = scmp.eq.s32.totalorder %s19, 0
    %p54 = por %p52, %p53
    %p55 = scmp.ne.s32.totalorder %s41, %s42
    %p56 = scmp.eq.s32.totalorder %s20, 1
    %p57 = por %p55, %p56
    %p59 = scmp.ne.s32.totalorder %s42, %s58
    %p60 = scmp.eq.s32.totalorder %s20, 0
    %p61 = por %p59, %p60
    %s62 = smul.u32 %s22, 16
    %s63 = ssub.s32 %s62, 1
    %p64 = scmp.gt.s32.totalorder %s63, 0
    %s65 = scalar_select %p64, %s63, 0
    %s66 = smul.u32 %s29, 16
    %s67 = ssub.s32 %s66, 1
    %p68 = scmp.gt.s32.totalorder %s67, 0
    %s69 = scalar_select %p68, %s67, 0
    %s70 = ssub.s32 %s21, %s33
    %s71 = ssub.s32 %s65, %s69
    %s72 = sor.u32 %s70, %s71
    %p73 = scmp.eq.s32.totalorder %s72, 0
    %s75 = sadd.s32 %s74, 1
    %s76 = scalar_select %p73, %s74, %s75
    %p79 = pneg %p73
    %p80 = scmp.eq.s32.totalorder %s14, 1
    %p81 = por %p79, %p80
    %p82 = scmp.ne.s32.totalorder %s74, %s77
    %p83 = scmp.eq.s32.totalorder %s14, 0
    %p84 = por %p82, %p83
    %p85 = scmp.ne.s32.totalorder %s74, %s77
    %p86 = scmp.eq.s32.totalorder %s19, 1
    %p87 = por %p85, %p86
    %p88 = scmp.ne.s32.totalorder %s77, %s78
    %p89 = scmp.eq.s32.totalorder %s19, 0
    %p90 = por %p88, %p89
    %p91 = scmp.ne.s32.totalorder %s77, %s78
    %p92 = scmp.eq.s32.totalorder %s20, 1
    %p93 = por %p91, %p92
    %p95 = scmp.ne.s32.totalorder %s78, %s94
    %p96 = scmp.eq.s32.totalorder %s20, 0
    %p97 = por %p95, %p96
    %s99 = sadd.s32 %s98, 1
    %p102 = scmp.eq.s32.totalorder %s14, 1
    %p103 = scmp.ne.s32.totalorder %s98, %s100
    %p104 = scmp.eq.s32.totalorder %s14, 0
    %p105 = por %p103, %p104
    %p106 = scmp.ne.s32.totalorder %s98, %s100
    %p107 = scmp.eq.s32.totalorder %s19, 1
    %p108 = por %p106, %p107
    %p109 = scmp.ne.s32.totalorder %s100, %s101
    %p110 = scmp.eq.s32.totalorder %s19, 0
    %p111 = por %p109, %p110
    %p112 = scmp.ne.s32.totalorder %s100, %s101
    %p113 = scmp.eq.s32.totalorder %s20, 1
    %p114 = por %p112, %p113
    %p116 = scmp.ne.s32.totalorder %s101, %s115
    %p117 = scmp.eq.s32.totalorder %s20, 0
    %p118 = por %p116, %p117
    %s120 = sadd.s32 %s119, 1
    %p123 = scmp.eq.s32.totalorder %s14, 1
    %p124 = scmp.ne.s32.totalorder %s119, %s121
    %p125 = scmp.eq.s32.totalorder %s14, 0
    %p126 = por %p124, %p125
    %p127 = scmp.ne.s32.totalorder %s119, %s121
    %p128 = scmp.eq.s32.totalorder %s19, 1
    %p129 = por %p127, %p128
    %p130 = scmp.ne.s32.totalorder %s121, %s122
    %p131 = scmp.eq.s32.totalorder %s19, 0
    %p132 = por %p130, %p131
    %p133 = scmp.ne.s32.totalorder %s121, %s122
    %p134 = scmp.eq.s32.totalorder %s20, 1
    %p135 = por %p133, %p134
    %p137 = scmp.ne.s32.totalorder %s122, %s136
    %p138 = scmp.eq.s32.totalorder %s20, 0
    %p139 = por %p137, %p138
    %s141 = sadd.s32 %s140, 1
    %p144 = scmp.eq.s32.totalorder %s14, 1
    %p145 = scmp.ne.s32.totalorder %s140, %s142
    %p146 = scmp.eq.s32.totalorder %s14, 0
    %p147 = por %p145, %p146
    %p148 = scmp.ne.s32.totalorder %s140, %s142
    %p149 = scmp.eq.s32.totalorder %s19, 1
    %p150 = por %p148, %p149
    %p151 = scmp.ne.s32.totalorder %s142, %s143
    %p152 = scmp.eq.s32.totalorder %s19, 0
    %p153 = por %p151, %p152
    %p154 = scmp.ne.s32.totalorder %s142, %s143
    %p155 = scmp.eq.s32.totalorder %s20, 1
    %p156 = por %p154, %p155
    %p158 = scmp.ne.s32.totalorder %s143, %s157
    %p159 = scmp.eq.s32.totalorder %s20, 0
    %p160 = por %p158, %p159
    %s162 = sadd.s32 %s161, 1
    %p165 = scmp.eq.s32.totalorder %s14, 1
    %p166 = scmp.ne.s32.totalorder %s161, %s163
    %p167 = scmp.eq.s32.totalorder %s14, 0
    %p168 = por %p166, %p167
    %p169 = scmp.ne.s32.totalorder %s161, %s163
    %p170 = scmp.eq.s32.totalorder %s19, 1
    %p171 = por %p169, %p170
    %p172 = scmp.ne.s32.totalorder %s163, %s164
    %p173 = scmp.eq.s32.totalorder %s19, 0
    %p174 = por %p172, %p173
    %p175 = scmp.ne.s32.totalorder %s163, %s164
    %p176 = scmp.eq.s32.totalorder %s20, 1
    %p177 = por %p175, %p176
    %p179 = scmp.ne.s32.totalorder %s164, %s178
    %p180 = scmp.eq.s32.totalorder %s20, 0
    %p181 = por %p179, %p180
    %s183 = sadd.s32 %s182, 1
    %p186 = scmp.eq.s32.totalorder %s14, 1
    %p187 = scmp.ne.s32.totalorder %s182, %s184
    %p188 = scmp.eq.s32.totalorder %s14, 0
    %p189 = por %p187, %p188
    %p190 = scmp.ne.s32.totalorder %s182, %s184
    %p191 = scmp.eq.s32.totalorder %s19, 1
    %p192 = por %p190, %p191
    %p193 = scmp.ne.s32.totalorder %s184, %s185
    %p194 = scmp.eq.s32.totalorder %s19, 0
    %p195 = por %p193, %p194
    %p196 = scmp.ne.s32.totalorder %s184, %s185
    %p197 = scmp.eq.s32.totalorder %s20, 1
    %p198 = por %p196, %p197
    %p200 = scmp.ne.s32.totalorder %s185, %s199
    %p201 = scmp.eq.s32.totalorder %s20, 0
    %p202 = por %p200, %p201
    %s204 = sadd.s32 %s203, 1
    %p207 = scmp.eq.s32.totalorder %s14, 1
    %p208 = scmp.ne.s32.totalorder %s203, %s205
    %p209 = scmp.eq.s32.totalorder %s14, 0
    %p210 = por %p208, %p209
    %p211 = scmp.ne.s32.totalorder %s203, %s205
    %p212 = scmp.eq.s32.totalorder %s19, 1
    %p213 = por %p211, %p212
    %p214 = scmp.ne.s32.totalorder %s205, %s206
    %p215 = scmp.eq.s32.totalorder %s19, 0
    %p216 = por %p214, %p215
    %p217 = scmp.ne.s32.totalorder %s205, %s206
    %p218 = scmp.eq.s32.totalorder %s20, 1
    %p219 = por %p217, %p218
    %p221 = scmp.ne.s32.totalorder %s206, %s220
    %p222 = scmp.eq.s32.totalorder %s20, 0
    %p223 = por %p221, %p222
    %s224 = ssub.s32 %s21, %s33
    %s225 = ssub.s32 %s22, %s29
    %s226 = sor.u32 %s224, %s225
    %p227 = scmp.eq.s32.totalorder %s226, 0
    %s229 = sadd.s32 %s228, 1
    %s230 = scalar_select %p227, %s228, %s229
    %p233 = pneg %p227
    %p234 = scmp.eq.s32.totalorder %s14, 1
    %p235 = por %p233, %p234
    %p236 = scmp.ne.s32.totalorder %s228, %s231
    %p237 = scmp.eq.s32.totalorder %s14, 0
    %p238 = por %p236, %p237
    %p239 = scmp.ne.s32.totalorder %s228, %s231
    %p240 = scmp.eq.s32.totalorder %s19, 1
    %p241 = por %p239, %p240
    %p242 = scmp.ne.s32.totalorder %s231, %s232
    %p243 = scmp.eq.s32.totalorder %s19, 0
    %p244 = por %p242, %p243
    %p245 = scmp.ne.s32.totalorder %s231, %s232
    %p246 = scmp.eq.s32.totalorder %s20, 1
    %p247 = por %p245, %p246
    %p249 = scmp.ne.s32.totalorder %s232, %s248
    %p250 = scmp.eq.s32.totalorder %s20, 0
    %p251 = por %p249, %p250
    %p252 = scmp.le.s32.totalorder 1, %s14
    %p253 = scmp.lt.s32.totalorder %s14, 3
    %p254 = pnand %p252, %p253
    %p255 = pneg %p254
    // Predicated region
    $region9: #{tpu_custom_call.1} parent=5 // pred_check
      _
    $region10: #{tpu_custom_call.1} parent=5 // pred_check_branch
      %257 = sbr.rel (%p254) target = $region12
    $region11: #{tpu_custom_call.1} parent=5 // pred_region
      %s258 = ssub.s32 %s14, 1
      // Predicated region
      $region13: #{tpu_custom_call.1} parent=11 // pred_check
        %p259 = pneg %p111
      $region14: #{tpu_custom_call.1} parent=11 // pred_check_branch
        %261 = sbr.rel (%p259) target = $region16
      $region15: #{tpu_custom_call.1} parent=11 // pred_region
        _
      $region16: #{tpu_custom_call.1} parent=11 // pred_fallthru
        _
      // Predicated region
      $region17: #{tpu_custom_call.1} parent=11 // pred_check
        %p262 = pneg %p132
      $region18: #{tpu_custom_call.1} parent=11 // pred_check_branch
        %264 = sbr.rel (%p262) target = $region20
      $region19: #{tpu_custom_call.1} parent=11 // pred_region
        _
      $region20: #{tpu_custom_call.1} parent=11 // pred_fallthru
        _
      // Predicated region
      $region21: #{tpu_custom_call.1} parent=11 // pred_check
        %p265 = pneg %p153
      $region22: #{tpu_custom_call.1} parent=11 // pred_check_branch
        %267 = sbr.rel (%p265) target = $region24
      $region23: #{tpu_custom_call.1} parent=11 // pred_region
        _
      $region24: #{tpu_custom_call.1} parent=11 // pred_fallthru
        _
      // Predicated region
      $region25: #{tpu_custom_call.1} parent=11 // pred_check
        %p268 = pneg %p174
      $region26: #{tpu_custom_call.1} parent=11 // pred_check_branch
        %270 = sbr.rel (%p268) target = $region28
      $region27: #{tpu_custom_call.1} parent=11 // pred_region
        _
      $region28: #{tpu_custom_call.1} parent=11 // pred_fallthru
        _
      // Predicated region
      $region29: #{tpu_custom_call.1} parent=11 // pred_check
        %p271 = pneg %p195
      $region30: #{tpu_custom_call.1} parent=11 // pred_check_branch
        %273 = sbr.rel (%p271) target = $region32
      $region31: #{tpu_custom_call.1} parent=11 // pred_region
        _
      $region32: #{tpu_custom_call.1} parent=11 // pred_fallthru
        _
      // Predicated region
      $region33: #{tpu_custom_call.1} parent=11 // pred_check
        %p274 = pneg %p216
      $region34: #{tpu_custom_call.1} parent=11 // pred_check_branch
        %276 = sbr.rel (%p274) target = $region36
      $region35: #{tpu_custom_call.1} parent=11 // pred_region
        _
      $region36: #{tpu_custom_call.1} parent=11 // pred_fallthru
        _
    $region12: #{tpu_custom_call.1} parent=5 // pred_fallthru
      _
    %p277 = scmp.lt.s32.totalorder %s14, 2
    // Predicated region
    $region37: #{tpu_custom_call.1} parent=5 // pred_check
      %p278 = pneg %p277
    $region38: #{tpu_custom_call.1} parent=5 // pred_check_branch
      %280 = sbr.rel (%p278) target = $region40
    $region39: #{tpu_custom_call.1} parent=5 // pred_region
      // Predicated region
      $region41: #{tpu_custom_call.1} parent=39 // pred_check
        %p281 = pneg %p48
      $region42: #{tpu_custom_call.1} parent=39 // pred_check_branch
        %283 = sbr.rel (%p281) target = $region44
      $region43: #{tpu_custom_call.1} parent=39 // pred_region
        %s284 = smul.u32 16, %s22
        %p285 = scmp.lt.s32.totalorder %s21, 1
        %s286 = scalar_select %p285, %s21, 1
        %p287 = scmp.lt.s32.totalorder %s284, 15
        %s288 = scalar_select %p287, %s284, 15
        %s289 = smul.addr %s286, 16
        %s290 = sadd.s32 %s288, %s289
        %s291 = smul.addr %s290, 4
        %s292 = scalar_lea.vmem %s0, %s291
        %s293 = smul.u32 16, %s22
      $region44: #{tpu_custom_call.1} parent=39 // pred_fallthru
        _
      // Predicated region
      $region45: #{tpu_custom_call.1} parent=39 // pred_check
        %p294 = pneg %p84
      $region46: #{tpu_custom_call.1} parent=39 // pred_check_branch
        %296 = sbr.rel (%p294) target = $region48
      $region47: #{tpu_custom_call.1} parent=39 // pred_region
        %s297 = smul.u32 %s22, 16
        %s298 = ssub.s32 %s297, 1
        %p299 = scmp.gt.s32.totalorder %s298, 0
        %s300 = scalar_select %p299, %s298, 0
        %p301 = scmp.lt.s32.totalorder %s21, 1
        %s302 = scalar_select %p301, %s21, 1
        %p303 = scmp.lt.s32.totalorder %s300, 15
        %s304 = scalar_select %p303, %s300, 15
        %s305 = smul.addr %s302, 16
        %s306 = sadd.s32 %s304, %s305
        %s307 = smul.addr %s306, 4
        %s308 = scalar_lea.vmem %s1, %s307
        %s309 = smul.u32 %s22, 16
        %s310 = ssub.s32 %s309, 1
        %p311 = scmp.gt.s32.totalorder %s310, 0
        %s312 = scalar_select %p311, %s310, 0
      $region48: #{tpu_custom_call.1} parent=39 // pred_fallthru
        _
    $region40: #{tpu_custom_call.1} parent=5 // pred_fallthru
      _
    %p313 = scmp.le.s32.totalorder 1, %s14
    %p314 = scmp.lt.s32.totalorder %s14, 3
    %p315 = pnand %p313, %p314
    %p316 = pneg %p315
    // Predicated region
    $region49: #{tpu_custom_call.1} parent=5 // pred_check
      _
    $region50: #{tpu_custom_call.1} parent=5 // pred_check_branch
      %318 = sbr.rel (%p315) target = $region52
    $region51: #{tpu_custom_call.1} parent=5 // pred_region
      %s319 = ssub.s32 %s14, 1
      %s320 = smul.u32 16, %s24
      %p321 = scmp.lt.s32.totalorder %s23, 1
      %s322 = scalar_select %p321, %s23, 1
      %p323 = scmp.lt.s32.totalorder %s320, 15
      %s324 = scalar_select %p323, %s320, 15
      %s325 = smul.addr %s322, 16
      %s326 = sadd.s32 %s324, %s325
      %s327 = smul.addr %s326, 4
      %s328 = scalar_lea.vmem %s0, %s327
      %p329 = pneg %p54
      %p330 = pneg %p51
      %s331 = smul.u32 %s24, 16
      %s332 = ssub.s32 %s331, 1
      %p333 = scmp.gt.s32.totalorder %s332, 0
      %s334 = scalar_select %p333, %s332, 0
      %p335 = scmp.lt.s32.totalorder %s23, 1
      %s336 = scalar_select %p335, %s23, 1
      %p337 = scmp.lt.s32.totalorder %s334, 15
      %s338 = scalar_select %p337, %s334, 15
      %s339 = smul.addr %s336, 16
      %s340 = sadd.s32 %s338, %s339
      %s341 = smul.addr %s340, 4
      %s342 = scalar_lea.vmem %s1, %s341
      %p343 = pneg %p90
      %p344 = pneg %p87
      %p345 = pneg %p111
      %p346 = pneg %p108
      %p347 = pneg %p132
      %p348 = pneg %p129
      %p349 = pneg %p153
      %p350 = pneg %p150
      %p351 = pneg %p174
      %p352 = pneg %p171
      %p353 = pneg %p195
      %p354 = pneg %p192
      %p355 = pneg %p216
      %p356 = pneg %p213
      %p357 = pneg %p244
      %p358 = pneg %p241
      %s359 = smul.u32 8, %s24
      %p360 = scmp.lt.s32.totalorder %s23, 1
      %s361 = scalar_select %p360, %s23, 1
      %p362 = scmp.lt.s32.totalorder %s359, 7
      %s363 = scalar_select %p362, %s359, 7
      %s364 = smul.addr %s361, 8
      %s365 = sadd.s32 %s363, %s364
      %s366 = smul.addr %s365, 4
      %s367 = scalar_lea.vmem %s8, %s366
      %s368 = smul.u32 16, %s24
      %p369 = scmp.lt.s32.totalorder %s23, 1
      %s370 = scalar_select %p369, %s23, 1
      %p371 = scmp.lt.s32.totalorder %s368, 15
      %s372 = scalar_select %p371, %s368, 15
      %s373 = smul.addr %s370, 16
      %s374 = sadd.s32 %s372, %s373
      %s375 = smul.addr %s374, 4
      %s376 = scalar_lea.vmem %s0, %s375
      %s377 = smul.u32 16, %s24
      %s378 = smul.u32 %s24, 16
      %s379 = ssub.s32 %s378, 1
      %p380 = scmp.gt.s32.totalorder %s379, 0
      %s381 = scalar_select %p380, %s379, 0
      %p382 = scmp.lt.s32.totalorder %s23, 1
      %s383 = scalar_select %p382, %s23, 1
      %p384 = scmp.lt.s32.totalorder %s381, 15
      %s385 = scalar_select %p384, %s381, 15
      %s386 = smul.addr %s383, 16
      %s387 = sadd.s32 %s385, %s386
      %s388 = smul.addr %s387, 4
      %s389 = scalar_lea.vmem %s1, %s388
      %s390 = smul.u32 %s24, 16
      %s391 = ssub.s32 %s390, 1
      %p392 = scmp.gt.s32.totalorder %s391, 0
      %s393 = scalar_select %p392, %s391, 0
      %s394 = smul.u32 8, %s24
      %p395 = scmp.lt.s32.totalorder %s23, 1
      %s396 = scalar_select %p395, %s23, 1
      %p397 = scmp.lt.s32.totalorder %s394, 7
      %s398 = scalar_select %p397, %s394, 7
      %s399 = smul.addr %s396, 8
      %s400 = sadd.s32 %s398, %s399
      %s401 = smul.addr %s400, 4
      %s402 = scalar_lea.vmem %s8, %s401
      %s403 = smul.u32 8, %s24
      %v405 = vld [vmem:[%s376] sm:$0xf]
      %v406 = vld [vmem:[%s376 + $0x4] sm:$0xf]
      %v407 = vld [vmem:[%s376 + $0x8] sm:$0xf]
      %v408 = vld [vmem:[%s376 + $0xc] sm:$0xf]
      %v409 = vld [vmem:[%s376 + $0x10] sm:$0xf]
      %v410 = vld [vmem:[%s376 + $0x14] sm:$0xf]
      %v411 = vld [vmem:[%s376 + $0x18] sm:$0xf]
      %v412 = vld [vmem:[%s376 + $0x1c] sm:$0xf]
      %v413 = vld [vmem:[%s376 + $0x20] sm:$0xf]
      %v414 = vld [vmem:[%s376 + $0x24] sm:$0xf]
      %v415 = vld [vmem:[%s376 + $0x28] sm:$0xf]
      %v416 = vld [vmem:[%s376 + $0x2c] sm:$0xf]
      %v417 = vld [vmem:[%s376 + $0x30] sm:$0xf]
      %v418 = vld [vmem:[%s376 + $0x34] sm:$0xf]
      %v419 = vld [vmem:[%s376 + $0x38] sm:$0xf]
      %v420 = vld [vmem:[%s376 + $0x3c] sm:$0xf]
      %437 = vrot.lane.b32.xlu0 %v405, 124
      %v438 = vpop.permute.xlu0 %437
      %439 = vrot.lane.b32.xlu0 %v406, 124
      %v440 = vpop.permute.xlu0 %439
      %441 = vrot.lane.b32.xlu0 %v407, 124
      %v442 = vpop.permute.xlu0 %441
      %443 = vrot.lane.b32.xlu0 %v408, 124
      %v444 = vpop.permute.xlu0 %443
      %445 = vrot.lane.b32.xlu0 %v409, 124
      %v446 = vpop.permute.xlu0 %445
      %447 = vrot.lane.b32.xlu0 %v410, 124
      %v448 = vpop.permute.xlu0 %447
      %449 = vrot.lane.b32.xlu0 %v411, 124
      %v450 = vpop.permute.xlu0 %449
      %451 = vrot.lane.b32.xlu0 %v412, 124
      %v452 = vpop.permute.xlu0 %451
      %453 = vrot.lane.b32.xlu0 %v413, 124
      %v454 = vpop.permute.xlu0 %453
      %455 = vrot.lane.b32.xlu0 %v414, 124
      %v456 = vpop.permute.xlu0 %455
      %457 = vrot.lane.b32.xlu0 %v415, 124
      %v458 = vpop.permute.xlu0 %457
      %459 = vrot.lane.b32.xlu0 %v416, 124
      %v460 = vpop.permute.xlu0 %459
      %461 = vrot.lane.b32.xlu0 %v417, 124
      %v462 = vpop.permute.xlu0 %461
      %463 = vrot.lane.b32.xlu0 %v418, 124
      %v464 = vpop.permute.xlu0 %463
      %465 = vrot.lane.b32.xlu0 %v419, 124
      %v466 = vpop.permute.xlu0 %465
      %467 = vrot.lane.b32.xlu0 %v420, 124
      %v468 = vpop.permute.xlu0 %467
      %v485 = vmax.bf16 %v405, %v438
      %v486 = vmax.bf16 %v406, %v440
      %v487 = vmax.bf16 %v407, %v442
      %v488 = vmax.bf16 %v408, %v444
      %v489 = vmax.bf16 %v409, %v446
      %v490 = vmax.bf16 %v410, %v448
      %v491 = vmax.bf16 %v411, %v450
      %v492 = vmax.bf16 %v412, %v452
      %v493 = vmax.bf16 %v413, %v454
      %v494 = vmax.bf16 %v414, %v456
      %v495 = vmax.bf16 %v415, %v458
      %v496 = vmax.bf16 %v416, %v460
      %v497 = vmax.bf16 %v417, %v462
      %v498 = vmax.bf16 %v418, %v464
      %v499 = vmax.bf16 %v419, %v466
      %v500 = vmax.bf16 %v420, %v468
      %v501 = vmax.bf16 %v485, %v486
      %v502 = vmax.bf16 %v487, %v488
      %v503 = vmax.bf16 %v489, %v490
      %v504 = vmax.bf16 %v491, %v492
      %v505 = vmax.bf16 %v493, %v494
      %v506 = vmax.bf16 %v495, %v496
      %v507 = vmax.bf16 %v497, %v498
      %v508 = vmax.bf16 %v499, %v500
      %v509 = vld [vmem:[%s2] sm:$0x3]
      %v510 = vld [vmem:[%s3] sm:$0x1]
      %v512 = vlaneseq
      %v513 = vshrl.u32 %v512, 7
      %v514 = vsub.s32 0, %v513
      %v515 = vrot.slane %v510, %v514
      %v525 = vunpack.c.l.b16 %v501
      %v526 = vunpack.c.l.b16 %v502
      %v527 = vunpack.c.l.b16 %v503
      %v528 = vunpack.c.l.b16 %v504
      %v529 = vunpack.c.l.b16 %v505
      %v530 = vunpack.c.l.b16 %v506
      %v531 = vunpack.c.l.b16 %v507
      %v532 = vunpack.c.l.b16 %v508
      %v533 = vpack.c.b16 %v526, %v525
      %v534 = vpack.c.b16 %v528, %v527
      %v535 = vpack.c.b16 %v530, %v529
      %v536 = vpack.c.b16 %v532, %v531
      %vm537 = vcmask 31744
      %v539 = vsel %vm537, %v533, 0
      %v542 = vsel %vm537, %v534, 0
      %v545 = vsel %vm537, %v535, 0
      %v548 = vsel %vm537, %v536, 0
      %vm550 = vcmask 1041408
      %v552 = vsel %vm550, %v509, 0
      %554 = vmatprep.subr.bf16.mxu0 0
      %555 = vmatpush1.bf16.msra.mxu0 0
      %556 = vmatprep.subr.bf16.mxu0 0
      %557 = vmatpush1.bf16.msra.mxu0 0
      %558 = vmatprep.subr.bf16.mxu0 0
      %559 = vmatpush1.bf16.msra.mxu0 0
      %560 = vmatprep.subr.bf16.mxu0 0
      %561 = vmatpush1.bf16.msra.mxu0 0
      %562 = vmatprep.subr.bf16.mxu0 0
      %563 = vmatpush1.bf16.msra.mxu0 0
      %564 = vmatprep.subr.bf16.mxu0 0
      %565 = vmatpush1.bf16.msra.mxu0 0
      %566 = vmatprep.subr.bf16.mxu0 0
      %567 = vmatpush1.bf16.msra.mxu0 0
      %568 = vmatprep.subr.bf16.mxu0 0
      %569 = vmatpush1.bf16.msra.mxu0 %v552
      %570 = vmatprep.subr.bf16.mxu0 0
      %571 = vmatpush2.bf16.msra.mxu0 0
      %572 = vmatprep.subr.bf16.mxu0 0
      %573 = vmatpush2.bf16.msra.mxu0 0
      %574 = vmatprep.subr.bf16.mxu0 0
      %575 = vmatpush2.bf16.msra.mxu0 0
      %576 = vmatprep.subr.bf16.mxu0 0
      %577 = vmatpush2.bf16.msra.mxu0 0
      %578 = vmatprep.subr.bf16.mxu0 0
      %579 = vmatpush2.bf16.msra.mxu0 0
      %580 = vmatprep.subr.bf16.mxu0 0
      %581 = vmatpush2.bf16.msra.mxu0 0
      %582 = vmatprep.subr.bf16.mxu0 0
      %583 = vmatpush2.bf16.msra.mxu0 0
      %584 = vmatprep.subr.bf16.mxu0 0
      %585 = vmatpush2.bf16.msra.mxu0 0
      %586 = vmatprep.mubr.bf16.mxu0 0
      %587 = vmatmul.mubr.bf16.gmra.mxu0 %v539
      %v588 = vpop.f32.mrf.mxu0
      %v589 = vadd.f32 %v515, %v588
      %v590 = vpop.f32.mrf.mxu0
      %v591 = vpop.f32.mrf.mxu0
      %v592 = vadd.f32 %v515, %v591
      %v593 = vpop.f32.mrf.mxu0
      %594 = vmatprep.mubr.bf16.mxu0 0
      %595 = vmatmul.mubr.bf16.gmra.mxu0 %v542
      %v596 = vpop.f32.mrf.mxu0
      %v597 = vadd.f32 %v515, %v596
      %v598 = vpop.f32.mrf.mxu0
      %v599 = vpop.f32.mrf.mxu0
      %v600 = vadd.f32 %v515, %v599
      %v601 = vpop.f32.mrf.mxu0
      %602 = vmatprep.mubr.bf16.mxu0 0
      %603 = vmatmul.mubr.bf16.gmra.mxu0 %v545
      %v604 = vpop.f32.mrf.mxu0
      %v605 = vadd.f32 %v515, %v604
      %v606 = vpop.f32.mrf.mxu0
      %v607 = vpop.f32.mrf.mxu0
      %v608 = vadd.f32 %v515, %v607
      %v609 = vpop.f32.mrf.mxu0
      %610 = vmatprep.mubr.bf16.mxu0 0
      %611 = vmatmul.mubr.bf16.gmra.mxu0 %v548
      %v612 = vpop.f32.mrf.mxu0
      %v613 = vadd.f32 %v515, %v612
      %v614 = vpop.f32.mrf.mxu0
      %v615 = vpop.f32.mrf.mxu0
      %v616 = vadd.f32 %v515, %v615
      %v617 = vpop.f32.mrf.mxu0
      %618 = vdwg.mxu0
      %v619 = vsub.f32 0.0, %v589
      %v620 = vsub.f32 0.0, %v592
      %v621 = vsub.f32 0.0, %v597
      %v622 = vsub.f32 0.0, %v600
      %v623 = vsub.f32 0.0, %v605
      %v624 = vsub.f32 0.0, %v608
      %v625 = vsub.f32 0.0, %v613
      %v626 = vsub.f32 0.0, %v616
      %v627 = vmul.f32 %v619, 1.442695
      %v628 = vpow.pop %v627
      %v629 = vmul.f32 %v620, 1.442695
      %v630 = vpow.pop %v629
      %v631 = vmul.f32 %v621, 1.442695
      %v632 = vpow.pop %v631
      %v633 = vmul.f32 %v622, 1.442695
      %v634 = vpow.pop %v633
      %v635 = vmul.f32 %v623, 1.442695
      %v636 = vpow.pop %v635
      %v637 = vmul.f32 %v624, 1.442695
      %v638 = vpow.pop %v637
      %v639 = vmul.f32 %v625, 1.442695
      %v640 = vpow.pop %v639
      %v641 = vmul.f32 %v626, 1.442695
      %v642 = vpow.pop %v641
      %v643 = vadd.f32 %v628, 1.0
      %v644 = vadd.f32 %v630, 1.0
      %v645 = vadd.f32 %v632, 1.0
      %v646 = vadd.f32 %v634, 1.0
      %v647 = vadd.f32 %v636, 1.0
      %v648 = vadd.f32 %v638, 1.0
      %v649 = vadd.f32 %v640, 1.0
      %v650 = vadd.f32 %v642, 1.0
      %v651 = vrcp.pop %v643
      %v652 = vmul.f32 1.0, %v651
      %v653 = vrcp.pop %v644
      %v654 = vmul.f32 1.0, %v653
      %v655 = vrcp.pop %v645
      %v656 = vmul.f32 1.0, %v655
      %v657 = vrcp.pop %v646
      %v658 = vmul.f32 1.0, %v657
      %v659 = vrcp.pop %v647
      %v660 = vmul.f32 1.0, %v659
      %v661 = vrcp.pop %v648
      %v662 = vmul.f32 1.0, %v661
      %v663 = vrcp.pop %v649
      %v664 = vmul.f32 1.0, %v663
      %v665 = vrcp.pop %v650
      %v666 = vmul.f32 1.0, %v665
      %v667 = vmul.f32 %v589, %v652
      %v668 = vmul.f32 %v592, %v654
      %v669 = vmul.f32 %v597, %v656
      %v670 = vmul.f32 %v600, %v658
      %v671 = vmul.f32 %v605, %v660
      %v672 = vmul.f32 %v608, %v662
      %v673 = vmul.f32 %v613, %v664
      %v674 = vmul.f32 %v616, %v666
      %v675 = vld [vmem:[%s4] sm:$0x3]
      %v676 = vld [vmem:[%s5] sm:$0x1]
      %v678 = vlaneseq
      %v679 = vshrl.u32 %v678, 7
      %v680 = vsub.s32 0, %v679
      %v681 = vrot.slane %v676, %v680
      %v683 = vunpack.c.l.b16 %v405
      %v684 = vunpack.c.l.b16 %v406
      %v685 = vunpack.c.l.b16 %v407
      %v686 = vunpack.c.l.b16 %v408
      %v687 = vunpack.c.l.b16 %v409
      %v688 = vunpack.c.l.b16 %v410
      %v689 = vunpack.c.l.b16 %v411
      %v690 = vunpack.c.l.b16 %v412
      %v691 = vunpack.c.l.b16 %v413
      %v692 = vunpack.c.l.b16 %v414
      %v693 = vunpack.c.l.b16 %v415
      %v694 = vunpack.c.l.b16 %v416
      %v695 = vunpack.c.l.b16 %v417
      %v696 = vunpack.c.l.b16 %v418
      %v697 = vunpack.c.l.b16 %v419
      %v698 = vunpack.c.l.b16 %v420
      %v699 = vpack.c.b16 %v684, %v683
      %v700 = vpack.c.b16 %v686, %v685
      %v701 = vpack.c.b16 %v688, %v687
      %v702 = vpack.c.b16 %v690, %v689
      %v703 = vpack.c.b16 %v692, %v691
      %v704 = vpack.c.b16 %v694, %v693
      %v705 = vpack.c.b16 %v696, %v695
      %v706 = vpack.c.b16 %v698, %v697
      %v708 = vsel %vm537, %v699, 0
      %v711 = vsel %vm537, %v700, 0
      %v714 = vsel %vm537, %v701, 0
      %v717 = vsel %vm537, %v702, 0
      %v720 = vsel %vm537, %v703, 0
      %v723 = vsel %vm537, %v704, 0
      %v726 = vsel %vm537, %v705, 0
      %v729 = vsel %vm537, %v706, 0
      %v732 = vsel %vm550, %v675, 0
      %734 = vmatprep.subr.bf16.mxu0 0
      %735 = vmatpush1.bf16.msra.mxu0 0
      %736 = vmatprep.subr.bf16.mxu0 0
      %737 = vmatpush1.bf16.msra.mxu0 0
      %738 = vmatprep.subr.bf16.mxu0 0
      %739 = vmatpush1.bf16.msra.mxu0 0
      %740 = vmatprep.subr.bf16.mxu0 0
      %741 = vmatpush1.bf16.msra.mxu0 0
      %742 = vmatprep.subr.bf16.mxu0 0
      %743 = vmatpush1.bf16.msra.mxu0 0
      %744 = vmatprep.subr.bf16.mxu0 0
      %745 = vmatpush1.bf16.msra.mxu0 0
      %746 = vmatprep.subr.bf16.mxu0 0
      %747 = vmatpush1.bf16.msra.mxu0 0
      %748 = vmatprep.subr.bf16.mxu0 0
      %749 = vmatpush1.bf16.msra.mxu0 %v732
      %750 = vmatprep.subr.bf16.mxu0 0
      %751 = vmatpush2.bf16.msra.mxu0 0
      %752 = vmatprep.subr.bf16.mxu0 0
      %753 = vmatpush2.bf16.msra.mxu0 0
      %754 = vmatprep.subr.bf16.mxu0 0
      %755 = vmatpush2.bf16.msra.mxu0 0
      %756 = vmatprep.subr.bf16.mxu0 0
      %757 = vmatpush2.bf16.msra.mxu0 0
      %758 = vmatprep.subr.bf16.mxu0 0
      %759 = vmatpush2.bf16.msra.mxu0 0
      %760 = vmatprep.subr.bf16.mxu0 0
      %761 = vmatpush2.bf16.msra.mxu0 0
      %762 = vmatprep.subr.bf16.mxu0 0
      %763 = vmatpush2.bf16.msra.mxu0 0
      %764 = vmatprep.subr.bf16.mxu0 0
      %765 = vmatpush2.bf16.msra.mxu0 0
      %766 = vmatprep.mubr.bf16.mxu0 0
      %767 = vmatmul.mubr.bf16.gmra.mxu0 %v708
      %v768 = vpop.f32.mrf.mxu0
      %v769 = vadd.f32 %v681, %v768
      %v770 = vpop.f32.mrf.mxu0
      %v771 = vpop.f32.mrf.mxu0
      %v772 = vadd.f32 %v681, %v771
      %v773 = vpop.f32.mrf.mxu0
      %774 = vmatprep.mubr.bf16.mxu0 0
      %775 = vmatmul.mubr.bf16.gmra.mxu0 %v711
      %v776 = vpop.f32.mrf.mxu0
      %v777 = vadd.f32 %v681, %v776
      %v778 = vpop.f32.mrf.mxu0
      %v779 = vpop.f32.mrf.mxu0
      %v780 = vadd.f32 %v681, %v779
      %v781 = vpop.f32.mrf.mxu0
      %782 = vmatprep.mubr.bf16.mxu0 0
      %783 = vmatmul.mubr.bf16.gmra.mxu0 %v714
      %v784 = vpop.f32.mrf.mxu0
      %v785 = vadd.f32 %v681, %v784
      %v786 = vpop.f32.mrf.mxu0
      %v787 = vpop.f32.mrf.mxu0
      %v788 = vadd.f32 %v681, %v787
      %v789 = vpop.f32.mrf.mxu0
      %790 = vmatprep.mubr.bf16.mxu0 0
      %791 = vmatmul.mubr.bf16.gmra.mxu0 %v717
      %v792 = vpop.f32.mrf.mxu0
      %v793 = vadd.f32 %v681, %v792
      %v794 = vpop.f32.mrf.mxu0
      %v795 = vpop.f32.mrf.mxu0
      %v796 = vadd.f32 %v681, %v795
      %v797 = vpop.f32.mrf.mxu0
      %798 = vmatprep.mubr.bf16.mxu0 0
      %799 = vmatmul.mubr.bf16.gmra.mxu0 %v720
      %v800 = vpop.f32.mrf.mxu0
      %v801 = vadd.f32 %v681, %v800
      %v802 = vpop.f32.mrf.mxu0
      %v803 = vpop.f32.mrf.mxu0
      %v804 = vadd.f32 %v681, %v803
      %v805 = vpop.f32.mrf.mxu0
      %806 = vmatprep.mubr.bf16.mxu0 0
      %807 = vmatmul.mubr.bf16.gmra.mxu0 %v723
      %v808 = vpop.f32.mrf.mxu0
      %v809 = vadd.f32 %v681, %v808
      %v810 = vpop.f32.mrf.mxu0
      %v811 = vpop.f32.mrf.mxu0
      %v812 = vadd.f32 %v681, %v811
      %v813 = vpop.f32.mrf.mxu0
      %814 = vmatprep.mubr.bf16.mxu0 0
      %815 = vmatmul.mubr.bf16.gmra.mxu0 %v726
      %v816 = vpop.f32.mrf.mxu0
      %v817 = vadd.f32 %v681, %v816
      %v818 = vpop.f32.mrf.mxu0
      %v819 = vpop.f32.mrf.mxu0
      %v820 = vadd.f32 %v681, %v819
      %v821 = vpop.f32.mrf.mxu0
      %822 = vmatprep.mubr.bf16.mxu0 0
      %823 = vmatmul.mubr.bf16.gmra.mxu0 %v729
      %v824 = vpop.f32.mrf.mxu0
      %v825 = vadd.f32 %v681, %v824
      %v826 = vpop.f32.mrf.mxu0
      %v827 = vpop.f32.mrf.mxu0
      %v828 = vadd.f32 %v681, %v827
      %v829 = vpop.f32.mrf.mxu0
      %830 = vdwg.mxu0
      %v831 = vsub.f32 0.0, %v769
      %v832 = vsub.f32 0.0, %v772
      %v833 = vsub.f32 0.0, %v777
      %v834 = vsub.f32 0.0, %v780
      %v835 = vsub.f32 0.0, %v785
      %v836 = vsub.f32 0.0, %v788
      %v837 = vsub.f32 0.0, %v793
      %v838 = vsub.f32 0.0, %v796
      %v839 = vsub.f32 0.0, %v801
      %v840 = vsub.f32 0.0, %v804
      %v841 = vsub.f32 0.0, %v809
      %v842 = vsub.f32 0.0, %v812
      %v843 = vsub.f32 0.0, %v817
      %v844 = vsub.f32 0.0, %v820
      %v845 = vsub.f32 0.0, %v825
      %v846 = vsub.f32 0.0, %v828
      %v847 = vmul.f32 %v831, 1.442695
      %v848 = vpow.pop %v847
      %v849 = vmul.f32 %v832, 1.442695
      %v850 = vpow.pop %v849
      %v851 = vmul.f32 %v833, 1.442695
      %v852 = vpow.pop %v851
      %v853 = vmul.f32 %v834, 1.442695
      %v854 = vpow.pop %v853
      %v855 = vmul.f32 %v835, 1.442695
      %v856 = vpow.pop %v855
      %v857 = vmul.f32 %v836, 1.442695
      %v858 = vpow.pop %v857
      %v859 = vmul.f32 %v837, 1.442695
      %v860 = vpow.pop %v859
      %v861 = vmul.f32 %v838, 1.442695
      %v862 = vpow.pop %v861
      %v863 = vmul.f32 %v839, 1.442695
      %v864 = vpow.pop %v863
      %v865 = vmul.f32 %v840, 1.442695
      %v866 = vpow.pop %v865
      %v867 = vmul.f32 %v841, 1.442695
      %v868 = vpow.pop %v867
      %v869 = vmul.f32 %v842, 1.442695
      %v870 = vpow.pop %v869
      %v871 = vmul.f32 %v843, 1.442695
      %v872 = vpow.pop %v871
      %v873 = vmul.f32 %v844, 1.442695
      %v874 = vpow.pop %v873
      %v875 = vmul.f32 %v845, 1.442695
      %v876 = vpow.pop %v875
      %v877 = vmul.f32 %v846, 1.442695
      %v878 = vpow.pop %v877
      %v879 = vadd.f32 %v848, 1.0
      %v880 = vadd.f32 %v850, 1.0
      %v881 = vadd.f32 %v852, 1.0
      %v882 = vadd.f32 %v854, 1.0
      %v883 = vadd.f32 %v856, 1.0
      %v884 = vadd.f32 %v858, 1.0
      %v885 = vadd.f32 %v860, 1.0
      %v886 = vadd.f32 %v862, 1.0
      %v887 = vadd.f32 %v864, 1.0
      %v888 = vadd.f32 %v866, 1.0
      %v889 = vadd.f32 %v868, 1.0
      %v890 = vadd.f32 %v870, 1.0
      %v891 = vadd.f32 %v872, 1.0
      %v892 = vadd.f32 %v874, 1.0
      %v893 = vadd.f32 %v876, 1.0
      %v894 = vadd.f32 %v878, 1.0
      %v895 = vrcp.pop %v879
      %v896 = vmul.f32 1.0, %v895
      %v897 = vrcp.pop %v880
      %v898 = vmul.f32 1.0, %v897
      %v899 = vrcp.pop %v881
      %v900 = vmul.f32 1.0, %v899
      %v901 = vrcp.pop %v882
      %v902 = vmul.f32 1.0, %v901
      %v903 = vrcp.pop %v883
      %v904 = vmul.f32 1.0, %v903
      %v905 = vrcp.pop %v884
      %v906 = vmul.f32 1.0, %v905
      %v907 = vrcp.pop %v885
      %v908 = vmul.f32 1.0, %v907
      %v909 = vrcp.pop %v886
      %v910 = vmul.f32 1.0, %v909
      %v911 = vrcp.pop %v887
      %v912 = vmul.f32 1.0, %v911
      %v913 = vrcp.pop %v888
      %v914 = vmul.f32 1.0, %v913
      %v915 = vrcp.pop %v889
      %v916 = vmul.f32 1.0, %v915
      %v917 = vrcp.pop %v890
      %v918 = vmul.f32 1.0, %v917
      %v919 = vrcp.pop %v891
      %v920 = vmul.f32 1.0, %v919
      %v921 = vrcp.pop %v892
      %v922 = vmul.f32 1.0, %v921
      %v923 = vrcp.pop %v893
      %v924 = vmul.f32 1.0, %v923
      %v925 = vrcp.pop %v894
      %v926 = vmul.f32 1.0, %v925
      %v927 = vmul.f32 %v769, %v896
      %v928 = vmul.f32 %v772, %v898
      %v929 = vmul.f32 %v777, %v900
      %v930 = vmul.f32 %v780, %v902
      %v931 = vmul.f32 %v785, %v904
      %v932 = vmul.f32 %v788, %v906
      %v933 = vmul.f32 %v793, %v908
      %v934 = vmul.f32 %v796, %v910
      %v935 = vmul.f32 %v801, %v912
      %v936 = vmul.f32 %v804, %v914
      %v937 = vmul.f32 %v809, %v916
      %v938 = vmul.f32 %v812, %v918
      %v939 = vmul.f32 %v817, %v920
      %v940 = vmul.f32 %v820, %v922
      %v941 = vmul.f32 %v825, %v924
      %v942 = vmul.f32 %v828, %v926
      %943 = vrot.lane.b32.xlu0 %v699, 124
      %v944 = vpop.permute.xlu0 %943
      %945 = vrot.lane.b32.xlu0 %v700, 124
      %v946 = vpop.permute.xlu0 %945
      %947 = vrot.lane.b32.xlu0 %v701, 124
      %v948 = vpop.permute.xlu0 %947
      %949 = vrot.lane.b32.xlu0 %v702, 124
      %v950 = vpop.permute.xlu0 %949
      %951 = vrot.lane.b32.xlu0 %v703, 124
      %v952 = vpop.permute.xlu0 %951
      %953 = vrot.lane.b32.xlu0 %v704, 124
      %v954 = vpop.permute.xlu0 %953
      %955 = vrot.lane.b32.xlu0 %v705, 124
      %v956 = vpop.permute.xlu0 %955
      %957 = vrot.lane.b32.xlu0 %v706, 124
      %v958 = vpop.permute.xlu0 %957
      %v960 = vsel %vm537, %v944, 0
      %v963 = vsel %vm537, %v946, 0
      %v966 = vsel %vm537, %v948, 0
      %v969 = vsel %vm537, %v950, 0
      %v972 = vsel %vm537, %v952, 0
      %v975 = vsel %vm537, %v954, 0
      %v978 = vsel %vm537, %v956, 0
      %v981 = vsel %vm537, %v958, 0
      %983 = vmatprep.subr.bf16.mxu0 0
      %984 = vmatpush1.bf16.msra.mxu0 0
      %985 = vmatprep.subr.bf16.mxu0 0
      %986 = vmatpush1.bf16.msra.mxu0 0
      %987 = vmatprep.subr.bf16.mxu0 0
      %988 = vmatpush1.bf16.msra.mxu0 0
      %989 = vmatprep.subr.bf16.mxu0 0
      %990 = vmatpush1.bf16.msra.mxu0 0
      %991 = vmatprep.subr.bf16.mxu0 0
      %992 = vmatpush1.bf16.msra.mxu0 0
      %993 = vmatprep.subr.bf16.mxu0 0
      %994 = vmatpush1.bf16.msra.mxu0 0
      %995 = vmatprep.subr.bf16.mxu0 0
      %996 = vmatpush1.bf16.msra.mxu0 0
      %997 = vmatprep.subr.bf16.mxu0 0
      %998 = vmatpush1.bf16.msra.mxu0 %v732
      %999 = vmatprep.subr.bf16.mxu0 0
      %1000 = vmatpush2.bf16.msra.mxu0 0
      %1001 = vmatprep.subr.bf16.mxu0 0
      %1002 = vmatpush2.bf16.msra.mxu0 0
      %1003 = vmatprep.subr.bf16.mxu0 0
      %1004 = vmatpush2.bf16.msra.mxu0 0
      %1005 = vmatprep.subr.bf16.mxu0 0
      %1006 = vmatpush2.bf16.msra.mxu0 0
      %1007 = vmatprep.subr.bf16.mxu0 0
      %1008 = vmatpush2.bf16.msra.mxu0 0
      %1009 = vmatprep.subr.bf16.mxu0 0
      %1010 = vmatpush2.bf16.msra.mxu0 0
      %1011 = vmatprep.subr.bf16.mxu0 0
      %1012 = vmatpush2.bf16.msra.mxu0 0
      %1013 = vmatprep.subr.bf16.mxu0 0
      %1014 = vmatpush2.bf16.msra.mxu0 0
      %1015 = vmatprep.mubr.bf16.mxu0 0
      %1016 = vmatmul.mubr.bf16.gmra.mxu0 %v960
      %v1017 = vpop.f32.mrf.mxu0
      %v1018 = vadd.f32 %v681, %v1017
      %v1019 = vpop.f32.mrf.mxu0
      %v1020 = vpop.f32.mrf.mxu0
      %v1021 = vadd.f32 %v681, %v1020
      %v1022 = vpop.f32.mrf.mxu0
      %1023 = vmatprep.mubr.bf16.mxu0 0
      %1024 = vmatmul.mubr.bf16.gmra.mxu0 %v963
      %v1025 = vpop.f32.mrf.mxu0
      %v1026 = vadd.f32 %v681, %v1025
      %v1027 = vpop.f32.mrf.mxu0
      %v1028 = vpop.f32.mrf.mxu0
      %v1029 = vadd.f32 %v681, %v1028
      %v1030 = vpop.f32.mrf.mxu0
      %1031 = vmatprep.mubr.bf16.mxu0 0
      %1032 = vmatmul.mubr.bf16.gmra.mxu0 %v966
      %v1033 = vpop.f32.mrf.mxu0
      %v1034 = vadd.f32 %v681, %v1033
      %v1035 = vpop.f32.mrf.mxu0
      %v1036 = vpop.f32.mrf.mxu0
      %v1037 = vadd.f32 %v681, %v1036
      %v1038 = vpop.f32.mrf.mxu0
      %1039 = vmatprep.mubr.bf16.mxu0 0
      %1040 = vmatmul.mubr.bf16.gmra.mxu0 %v969
      %v1041 = vpop.f32.mrf.mxu0
      %v1042 = vadd.f32 %v681, %v1041
      %v1043 = vpop.f32.mrf.mxu0
      %v1044 = vpop.f32.mrf.mxu0
      %v1045 = vadd.f32 %v681, %v1044
      %v1046 = vpop.f32.mrf.mxu0
      %1047 = vmatprep.mubr.bf16.mxu0 0
      %1048 = vmatmul.mubr.bf16.gmra.mxu0 %v972
      %v1049 = vpop.f32.mrf.mxu0
      %v1050 = vadd.f32 %v681, %v1049
      %v1051 = vpop.f32.mrf.mxu0
      %v1052 = vpop.f32.mrf.mxu0
      %v1053 = vadd.f32 %v681, %v1052
      %v1054 = vpop.f32.mrf.mxu0
      %1055 = vmatprep.mubr.bf16.mxu0 0
      %1056 = vmatmul.mubr.bf16.gmra.mxu0 %v975
      %v1057 = vpop.f32.mrf.mxu0
      %v1058 = vadd.f32 %v681, %v1057
      %v1059 = vpop.f32.mrf.mxu0
      %v1060 = vpop.f32.mrf.mxu0
      %v1061 = vadd.f32 %v681, %v1060
      %v1062 = vpop.f32.mrf.mxu0
      %1063 = vmatprep.mubr.bf16.mxu0 0
      %1064 = vmatmul.mubr.bf16.gmra.mxu0 %v978
      %v1065 = vpop.f32.mrf.mxu0
      %v1066 = vadd.f32 %v681, %v1065
      %v1067 = vpop.f32.mrf.mxu0
      %v1068 = vpop.f32.mrf.mxu0
      %v1069 = vadd.f32 %v681, %v1068
      %v1070 = vpop.f32.mrf.mxu0
      %1071 = vmatprep.mubr.bf16.mxu0 0
      %1072 = vmatmul.mubr.bf16.gmra.mxu0 %v981
      %v1073 = vpop.f32.mrf.mxu0
      %v1074 = vadd.f32 %v681, %v1073
      %v1075 = vpop.f32.mrf.mxu0
      %v1076 = vpop.f32.mrf.mxu0
      %v1077 = vadd.f32 %v681, %v1076
      %v1078 = vpop.f32.mrf.mxu0
      %1079 = vdwg.mxu0
      %v1080 = vsub.f32 0.0, %v1018
      %v1081 = vsub.f32 0.0, %v1021
      %v1082 = vsub.f32 0.0, %v1026
      %v1083 = vsub.f32 0.0, %v1029
      %v1084 = vsub.f32 0.0, %v1034
      %v1085 = vsub.f32 0.0, %v1037
      %v1086 = vsub.f32 0.0, %v1042
      %v1087 = vsub.f32 0.0, %v1045
      %v1088 = vsub.f32 0.0, %v1050
      %v1089 = vsub.f32 0.0, %v1053
      %v1090 = vsub.f32 0.0, %v1058
      %v1091 = vsub.f32 0.0, %v1061
      %v1092 = vsub.f32 0.0, %v1066
      %v1093 = vsub.f32 0.0, %v1069
      %v1094 = vsub.f32 0.0, %v1074
      %v1095 = vsub.f32 0.0, %v1077
      %v1096 = vmul.f32 %v1080, 1.442695
      %v1097 = vpow.pop %v1096
      %v1098 = vmul.f32 %v1081, 1.442695
      %v1099 = vpow.pop %v1098
      %v1100 = vmul.f32 %v1082, 1.442695
      %v1101 = vpow.pop %v1100
      %v1102 = vmul.f32 %v1083, 1.442695
      %v1103 = vpow.pop %v1102
      %v1104 = vmul.f32 %v1084, 1.442695
      %v1105 = vpow.pop %v1104
      %v1106 = vmul.f32 %v1085, 1.442695
      %v1107 = vpow.pop %v1106
      %v1108 = vmul.f32 %v1086, 1.442695
      %v1109 = vpow.pop %v1108
      %v1110 = vmul.f32 %v1087, 1.442695
      %v1111 = vpow.pop %v1110
      %v1112 = vmul.f32 %v1088, 1.442695
      %v1113 = vpow.pop %v1112
      %v1114 = vmul.f32 %v1089, 1.442695
      %v1115 = vpow.pop %v1114
      %v1116 = vmul.f32 %v1090, 1.442695
      %v1117 = vpow.pop %v1116
      %v1118 = vmul.f32 %v1091, 1.442695
      %v1119 = vpow.pop %v1118
      %v1120 = vmul.f32 %v1092, 1.442695
      %v1121 = vpow.pop %v1120
      %v1122 = vmul.f32 %v1093, 1.442695
      %v1123 = vpow.pop %v1122
      %v1124 = vmul.f32 %v1094, 1.442695
      %v1125 = vpow.pop %v1124
      %v1126 = vmul.f32 %v1095, 1.442695
      %v1127 = vpow.pop %v1126
      %v1128 = vadd.f32 %v1097, 1.0
      %v1129 = vadd.f32 %v1099, 1.0
      %v1130 = vadd.f32 %v1101, 1.0
      %v1131 = vadd.f32 %v1103, 1.0
      %v1132 = vadd.f32 %v1105, 1.0
      %v1133 = vadd.f32 %v1107, 1.0
      %v1134 = vadd.f32 %v1109, 1.0
      %v1135 = vadd.f32 %v1111, 1.0
      %v1136 = vadd.f32 %v1113, 1.0
      %v1137 = vadd.f32 %v1115, 1.0
      %v1138 = vadd.f32 %v1117, 1.0
      %v1139 = vadd.f32 %v1119, 1.0
      %v1140 = vadd.f32 %v1121, 1.0
      %v1141 = vadd.f32 %v1123, 1.0
      %v1142 = vadd.f32 %v1125, 1.0
      %v1143 = vadd.f32 %v1127, 1.0
      %v1144 = vrcp.pop %v1128
      %v1145 = vmul.f32 1.0, %v1144
      %v1146 = vrcp.pop %v1129
      %v1147 = vmul.f32 1.0, %v1146
      %v1148 = vrcp.pop %v1130
      %v1149 = vmul.f32 1.0, %v1148
      %v1150 = vrcp.pop %v1131
      %v1151 = vmul.f32 1.0, %v1150
      %v1152 = vrcp.pop %v1132
      %v1153 = vmul.f32 1.0, %v1152
      %v1154 = vrcp.pop %v1133
      %v1155 = vmul.f32 1.0, %v1154
      %v1156 = vrcp.pop %v1134
      %v1157 = vmul.f32 1.0, %v1156
      %v1158 = vrcp.pop %v1135
      %v1159 = vmul.f32 1.0, %v1158
      %v1160 = vrcp.pop %v1136
      %v1161 = vmul.f32 1.0, %v1160
      %v1162 = vrcp.pop %v1137
      %v1163 = vmul.f32 1.0, %v1162
      %v1164 = vrcp.pop %v1138
      %v1165 = vmul.f32 1.0, %v1164
      %v1166 = vrcp.pop %v1139
      %v1167 = vmul.f32 1.0, %v1166
      %v1168 = vrcp.pop %v1140
      %v1169 = vmul.f32 1.0, %v1168
      %v1170 = vrcp.pop %v1141
      %v1171 = vmul.f32 1.0, %v1170
      %v1172 = vrcp.pop %v1142
      %v1173 = vmul.f32 1.0, %v1172
      %v1174 = vrcp.pop %v1143
      %v1175 = vmul.f32 1.0, %v1174
      %v1176 = vmul.f32 %v1018, %v1145
      %v1177 = vmul.f32 %v1021, %v1147
      %v1178 = vmul.f32 %v1026, %v1149
      %v1179 = vmul.f32 %v1029, %v1151
      %v1180 = vmul.f32 %v1034, %v1153
      %v1181 = vmul.f32 %v1037, %v1155
      %v1182 = vmul.f32 %v1042, %v1157
      %v1183 = vmul.f32 %v1045, %v1159
      %v1184 = vmul.f32 %v1050, %v1161
      %v1185 = vmul.f32 %v1053, %v1163
      %v1186 = vmul.f32 %v1058, %v1165
      %v1187 = vmul.f32 %v1061, %v1167
      %v1188 = vmul.f32 %v1066, %v1169
      %v1189 = vmul.f32 %v1069, %v1171
      %v1190 = vmul.f32 %v1074, %v1173
      %v1191 = vmul.f32 %v1077, %v1175
      %p1192 = scmp.gt.s32.totalorder %s24, 0
      %s1193 = scalar_select %p1192, 1, 0
      %s1194 = scvt.s32.f32 %s1193
      %v1195 = vld [vmem:[%s389] sm:$0xf]
      %v1197 = vsel %vm537, %v1195, 0
      %1199 = vmatprep.subr.bf16.mxu0 0
      %1200 = vmatpush1.bf16.msra.mxu0 0
      %1201 = vmatprep.subr.bf16.mxu0 0
      %1202 = vmatpush1.bf16.msra.mxu0 0
      %1203 = vmatprep.subr.bf16.mxu0 0
      %1204 = vmatpush1.bf16.msra.mxu0 0
      %1205 = vmatprep.subr.bf16.mxu0 0
      %1206 = vmatpush1.bf16.msra.mxu0 0
      %1207 = vmatprep.subr.bf16.mxu0 0
      %1208 = vmatpush1.bf16.msra.mxu0 0
      %1209 = vmatprep.subr.bf16.mxu0 0
      %1210 = vmatpush1.bf16.msra.mxu0 0
      %1211 = vmatprep.subr.bf16.mxu0 0
      %1212 = vmatpush1.bf16.msra.mxu0 0
      %1213 = vmatprep.subr.bf16.mxu0 0
      %1214 = vmatpush1.bf16.msra.mxu0 %v732
      %1215 = vmatprep.subr.bf16.mxu0 0
      %1216 = vmatpush2.bf16.msra.mxu0 0
      %1217 = vmatprep.subr.bf16.mxu0 0
      %1218 = vmatpush2.bf16.msra.mxu0 0
      %1219 = vmatprep.subr.bf16.mxu0 0
      %1220 = vmatpush2.bf16.msra.mxu0 0
      %1221 = vmatprep.subr.bf16.mxu0 0
      %1222 = vmatpush2.bf16.msra.mxu0 0
      %1223 = vmatprep.subr.bf16.mxu0 0
      %1224 = vmatpush2.bf16.msra.mxu0 0
      %1225 = vmatprep.subr.bf16.mxu0 0
      %1226 = vmatpush2.bf16.msra.mxu0 0
      %1227 = vmatprep.subr.bf16.mxu0 0
      %1228 = vmatpush2.bf16.msra.mxu0 0
      %1229 = vmatprep.subr.bf16.mxu0 0
      %1230 = vmatpush2.bf16.msra.mxu0 0
      %1231 = vmatprep.mubr.bf16.mxu0 0
      %1232 = vmatmul.mubr.bf16.gmra.mxu0 %v1197
      %v1233 = vpop.f32.mrf.mxu0
      %v1234 = vadd.f32 %v681, %v1233
      %v1235 = vpop.f32.mrf.mxu0
      %v1236 = vpop.f32.mrf.mxu0
      %v1237 = vpop.f32.mrf.mxu0
      %1238 = vdwg.mxu0
      %v1239 = vsub.f32 0.0, %v1234
      %v1240 = vmul.f32 %v1239, 1.442695
      %v1241 = vpow.pop %v1240
      %v1242 = vadd.f32 %v1241, 1.0
      %v1243 = vrcp.pop %v1242
      %v1244 = vmul.f32 1.0, %v1243
      %v1245 = vmul.f32 %v1234, %v1244
      %v1246 = vstv %s1194
      %v1247 = vmul.f32 %v1245, %v1246
      %v1249 = vunpack.c.l.b16 %v1195
      %v1250 = vpack.c.b16 %v1249, %v1249
      %1251 = vrot.lane.b32.xlu0 %v1250, 124
      %v1252 = vpop.permute.xlu0 %1251
      %v1254 = vsel %vm537, %v1252, 0
      %1256 = vmatprep.subr.bf16.mxu0 0
      %1257 = vmatpush1.bf16.msra.mxu0 0
      %1258 = vmatprep.subr.bf16.mxu0 0
      %1259 = vmatpush1.bf16.msra.mxu0 0
      %1260 = vmatprep.subr.bf16.mxu0 0
      %1261 = vmatpush1.bf16.msra.mxu0 0
      %1262 = vmatprep.subr.bf16.mxu0 0
      %1263 = vmatpush1.bf16.msra.mxu0 0
      %1264 = vmatprep.subr.bf16.mxu0 0
      %1265 = vmatpush1.bf16.msra.mxu0 0
      %1266 = vmatprep.subr.bf16.mxu0 0
      %1267 = vmatpush1.bf16.msra.mxu0 0
      %1268 = vmatprep.subr.bf16.mxu0 0
      %1269 = vmatpush1.bf16.msra.mxu0 0
      %1270 = vmatprep.subr.bf16.mxu0 0
      %1271 = vmatpush1.bf16.msra.mxu0 %v732
      %1272 = vmatprep.subr.bf16.mxu0 0
      %1273 = vmatpush2.bf16.msra.mxu0 0
      %1274 = vmatprep.subr.bf16.mxu0 0
      %1275 = vmatpush2.bf16.msra.mxu0 0
      %1276 = vmatprep.subr.bf16.mxu0 0
      %1277 = vmatpush2.bf16.msra.mxu0 0
      %1278 = vmatprep.subr.bf16.mxu0 0
      %1279 = vmatpush2.bf16.msra.mxu0 0
      %1280 = vmatprep.subr.bf16.mxu0 0
      %1281 = vmatpush2.bf16.msra.mxu0 0
      %1282 = vmatprep.subr.bf16.mxu0 0
      %1283 = vmatpush2.bf16.msra.mxu0 0
      %1284 = vmatprep.subr.bf16.mxu0 0
      %1285 = vmatpush2.bf16.msra.mxu0 0
      %1286 = vmatprep.subr.bf16.mxu0 0
      %1287 = vmatpush2.bf16.msra.mxu0 0
      %1288 = vmatprep.mubr.bf16.mxu0 0
      %1289 = vmatmul.mubr.bf16.gmra.mxu0 %v1254
      %v1290 = vpop.f32.mrf.mxu0
      %v1291 = vadd.f32 %v681, %v1290
      %v1292 = vpop.f32.mrf.mxu0
      %v1293 = vpop.f32.mrf.mxu0
      %v1294 = vpop.f32.mrf.mxu0
      %1295 = vdwg.mxu0
      %v1296 = vsub.f32 0.0, %v1291
      %v1297 = vmul.f32 %v1296, 1.442695
      %v1298 = vpow.pop %v1297
      %v1299 = vadd.f32 %v1298, 1.0
      %v1300 = vrcp.pop %v1299
      %v1301 = vmul.f32 1.0, %v1300
      %v1302 = vmul.f32 %v1291, %v1301
      %v1303 = vmul.f32 %v1302, %v1246
      %v1304 = vpack.c.bf16 %v1247, %v1247
      %vm1305 = vcmask 11264
      %1306 = vst.msk [vmem:[#allocation2] sm:$0xf] %vm1305, %v1304
      %v1307 = vpack.c.bf16 %v1303, %v1303
      %1308 = vst.msk [vmem:[#allocation3] sm:$0xf] %vm1305, %v1307
      %v1309 = vpack.c.bf16 %v928, %v927
      %v1310 = vpack.c.bf16 %v930, %v929
      %v1311 = vpack.c.bf16 %v932, %v931
      %v1312 = vpack.c.bf16 %v934, %v933
      %v1313 = vpack.c.bf16 %v936, %v935
      %v1314 = vpack.c.bf16 %v938, %v937
      %v1315 = vpack.c.bf16 %v940, %v939
      %v1316 = vpack.c.bf16 %v942, %v941
      %v1325 = vunpack.c.l.b16 %v1309
      %v1326 = vunpack.c.h.b16 %v1309
      %v1327 = vunpack.c.l.b16 %v1310
      %v1328 = vunpack.c.h.b16 %v1310
      %v1329 = vunpack.c.l.b16 %v1311
      %v1330 = vunpack.c.h.b16 %v1311
      %v1331 = vunpack.c.l.b16 %v1312
      %v1332 = vunpack.c.h.b16 %v1312
      %v1333 = vunpack.c.l.b16 %v1313
      %v1334 = vunpack.c.h.b16 %v1313
      %v1335 = vunpack.c.l.b16 %v1314
      %v1336 = vunpack.c.h.b16 %v1314
      %v1337 = vunpack.c.l.b16 %v1315
      %v1338 = vunpack.c.h.b16 %v1315
      %v1339 = vunpack.c.l.b16 %v1316
      %v1340 = vunpack.c.h.b16 %v1316
      %v1341 = vpack.c.b16 %v1325, %v1325
      %v1342 = vpack.c.b16 %v1326, %v1326
      %v1343 = vpack.c.b16 %v1327, %v1327
      %v1344 = vpack.c.b16 %v1328, %v1328
      %v1345 = vpack.c.b16 %v1329, %v1329
      %v1346 = vpack.c.b16 %v1330, %v1330
      %v1347 = vpack.c.b16 %v1331, %v1331
      %v1348 = vpack.c.b16 %v1332, %v1332
      %v1349 = vpack.c.b16 %v1333, %v1333
      %v1350 = vpack.c.b16 %v1334, %v1334
      %v1351 = vpack.c.b16 %v1335, %v1335
      %v1352 = vpack.c.b16 %v1336, %v1336
      %v1353 = vpack.c.b16 %v1337, %v1337
      %v1354 = vpack.c.b16 %v1338, %v1338
      %v1355 = vpack.c.b16 %v1339, %v1339
      %v1356 = vpack.c.b16 %v1340, %v1340
      %s1373 = scalar_lea.vmem [#allocation2], 4
      %1374 = vst.msk [vmem:[%s1373] sm:$0xf] %vm1305, %v1341
      %1375 = vst.msk [vmem:[%s1373 + $0x4] sm:$0xf] %vm1305, %v1342
      %1376 = vst.msk [vmem:[%s1373 + $0x8] sm:$0xf] %vm1305, %v1343
      %1377 = vst.msk [vmem:[%s1373 + $0xc] sm:$0xf] %vm1305, %v1344
      %1378 = vst.msk [vmem:[%s1373 + $0x10] sm:$0xf] %vm1305, %v1345
      %1379 = vst.msk [vmem:[%s1373 + $0x14] sm:$0xf] %vm1305, %v1346
      %1380 = vst.msk [vmem:[%s1373 + $0x18] sm:$0xf] %vm1305, %v1347
      %1381 = vst.msk [vmem:[%s1373 + $0x1c] sm:$0xf] %vm1305, %v1348
      %1382 = vst.msk [vmem:[%s1373 + $0x20] sm:$0xf] %vm1305, %v1349
      %1383 = vst.msk [vmem:[%s1373 + $0x24] sm:$0xf] %vm1305, %v1350
      %1384 = vst.msk [vmem:[%s1373 + $0x28] sm:$0xf] %vm1305, %v1351
      %1385 = vst.msk [vmem:[%s1373 + $0x2c] sm:$0xf] %vm1305, %v1352
      %1386 = vst.msk [vmem:[%s1373 + $0x30] sm:$0xf] %vm1305, %v1353
      %1387 = vst.msk [vmem:[%s1373 + $0x34] sm:$0xf] %vm1305, %v1354
      %1388 = vst.msk [vmem:[%s1373 + $0x38] sm:$0xf] %vm1305, %v1355
      %1389 = vst.msk [vmem:[%s1373 + $0x3c] sm:$0xf] %vm1305, %v1356
      %v1390 = vpack.c.bf16 %v1177, %v1176
      %v1391 = vpack.c.bf16 %v1179, %v1178
      %v1392 = vpack.c.bf16 %v1181, %v1180
      %v1393 = vpack.c.bf16 %v1183, %v1182
      %v1394 = vpack.c.bf16 %v1185, %v1184
      %v1395 = vpack.c.bf16 %v1187, %v1186
      %v1396 = vpack.c.bf16 %v1189, %v1188
      %v1397 = vpack.c.bf16 %v1191, %v1190
      %v1406 = vunpack.c.l.b16 %v1390
      %v1407 = vunpack.c.h.b16 %v1390
      %v1408 = vunpack.c.l.b16 %v1391
      %v1409 = vunpack.c.h.b16 %v1391
      %v1410 = vunpack.c.l.b16 %v1392
      %v1411 = vunpack.c.h.b16 %v1392
      %v1412 = vunpack.c.l.b16 %v1393
      %v1413 = vunpack.c.h.b16 %v1393
      %v1414 = vunpack.c.l.b16 %v1394
      %v1415 = vunpack.c.h.b16 %v1394
      %v1416 = vunpack.c.l.b16 %v1395
      %v1417 = vunpack.c.h.b16 %v1395
      %v1418 = vunpack.c.l.b16 %v1396
      %v1419 = vunpack.c.h.b16 %v1396
      %v1420 = vunpack.c.l.b16 %v1397
      %v1421 = vunpack.c.h.b16 %v1397
      %v1422 = vpack.c.b16 %v1406, %v1406
      %v1423 = vpack.c.b16 %v1407, %v1407
      %v1424 = vpack.c.b16 %v1408, %v1408
      %v1425 = vpack.c.b16 %v1409, %v1409
      %v1426 = vpack.c.b16 %v1410, %v1410
      %v1427 = vpack.c.b16 %v1411, %v1411
      %v1428 = vpack.c.b16 %v1412, %v1412
      %v1429 = vpack.c.b16 %v1413, %v1413
      %v1430 = vpack.c.b16 %v1414, %v1414
      %v1431 = vpack.c.b16 %v1415, %v1415
      %v1432 = vpack.c.b16 %v1416, %v1416
      %v1433 = vpack.c.b16 %v1417, %v1417
      %v1434 = vpack.c.b16 %v1418, %v1418
      %v1435 = vpack.c.b16 %v1419, %v1419
      %v1436 = vpack.c.b16 %v1420, %v1420
      %v1437 = vpack.c.b16 %v1421, %v1421
      %s1454 = scalar_lea.vmem [#allocation3], 4
      %1455 = vst.msk [vmem:[%s1454] sm:$0xf] %vm1305, %v1422
      %1456 = vst.msk [vmem:[%s1454 + $0x4] sm:$0xf] %vm1305, %v1423
      %1457 = vst.msk [vmem:[%s1454 + $0x8] sm:$0xf] %vm1305, %v1424
      %1458 = vst.msk [vmem:[%s1454 + $0xc] sm:$0xf] %vm1305, %v1425
      %1459 = vst.msk [vmem:[%s1454 + $0x10] sm:$0xf] %vm1305, %v1426
      %1460 = vst.msk [vmem:[%s1454 + $0x14] sm:$0xf] %vm1305, %v1427
      %1461 = vst.msk [vmem:[%s1454 + $0x18] sm:$0xf] %vm1305, %v1428
      %1462 = vst.msk [vmem:[%s1454 + $0x1c] sm:$0xf] %vm1305, %v1429
      %1463 = vst.msk [vmem:[%s1454 + $0x20] sm:$0xf] %vm1305, %v1430
      %1464 = vst.msk [vmem:[%s1454 + $0x24] sm:$0xf] %vm1305, %v1431
      %1465 = vst.msk [vmem:[%s1454 + $0x28] sm:$0xf] %vm1305, %v1432
      %1466 = vst.msk [vmem:[%s1454 + $0x2c] sm:$0xf] %vm1305, %v1433
      %1467 = vst.msk [vmem:[%s1454 + $0x30] sm:$0xf] %vm1305, %v1434
      %1468 = vst.msk [vmem:[%s1454 + $0x34] sm:$0xf] %vm1305, %v1435
      %1469 = vst.msk [vmem:[%s1454 + $0x38] sm:$0xf] %vm1305, %v1436
      %1470 = vst.msk [vmem:[%s1454 + $0x3c] sm:$0xf] %vm1305, %v1437
      %v1471 = vld [vmem:[#allocation2] sm:$0xf]
      %v1472 = vld [vmem:[#allocation2 + $0x4] sm:$0xf]
      %v1473 = vld [vmem:[#allocation2 + $0x8] sm:$0xf]
      %v1474 = vld [vmem:[#allocation2 + $0xc] sm:$0xf]
      %v1475 = vld [vmem:[#allocation2 + $0x10] sm:$0xf]
      %v1476 = vld [vmem:[#allocation2 + $0x14] sm:$0xf]
      %v1477 = vld [vmem:[#allocation2 + $0x18] sm:$0xf]
      %v1478 = vld [vmem:[#allocation2 + $0x1c] sm:$0xf]
      %v1479 = vld [vmem:[#allocation2 + $0x20] sm:$0xf]
      %v1480 = vld [vmem:[#allocation2 + $0x24] sm:$0xf]
      %v1481 = vld [vmem:[#allocation2 + $0x28] sm:$0xf]
      %v1482 = vld [vmem:[#allocation2 + $0x2c] sm:$0xf]
      %v1483 = vld [vmem:[#allocation2 + $0x30] sm:$0xf]
      %v1484 = vld [vmem:[#allocation2 + $0x34] sm:$0xf]
      %v1485 = vld [vmem:[#allocation2 + $0x38] sm:$0xf]
      %v1486 = vld [vmem:[#allocation2 + $0x3c] sm:$0xf]
      %v1487 = vld [vmem:[#allocation2 + $0x40] sm:$0xf]
      %v1488 = vld [vmem:[#allocation3] sm:$0xf]
      %v1489 = vld [vmem:[#allocation3 + $0x4] sm:$0xf]
      %v1490 = vld [vmem:[#allocation3 + $0x8] sm:$0xf]
      %v1491 = vld [vmem:[#allocation3 + $0xc] sm:$0xf]
      %v1492 = vld [vmem:[#allocation3 + $0x10] sm:$0xf]
      %v1493 = vld [vmem:[#allocation3 + $0x14] sm:$0xf]
      %v1494 = vld [vmem:[#allocation3 + $0x18] sm:$0xf]
      %v1495 = vld [vmem:[#allocation3 + $0x1c] sm:$0xf]
      %v1496 = vld [vmem:[#allocation3 + $0x20] sm:$0xf]
      %v1497 = vld [vmem:[#allocation3 + $0x24] sm:$0xf]
      %v1498 = vld [vmem:[#allocation3 + $0x28] sm:$0xf]
      %v1499 = vld [vmem:[#allocation3 + $0x2c] sm:$0xf]
      %v1500 = vld [vmem:[#allocation3 + $0x30] sm:$0xf]
      %v1501 = vld [vmem:[#allocation3 + $0x34] sm:$0xf]
      %v1502 = vld [vmem:[#allocation3 + $0x38] sm:$0xf]
      %v1503 = vld [vmem:[#allocation3 + $0x3c] sm:$0xf]
      %v1504 = vld [vmem:[#allocation3 + $0x40] sm:$0xf]
      %v1505 = vunpack.c.l.bf16 %v1488
      %v1506 = vunpack.c.l.bf16 %v1489
      %v1507 = vunpack.c.l.bf16 %v1490
      %v1508 = vunpack.c.l.bf16 %v1491
      %v1509 = vunpack.c.l.bf16 %v1492
      %v1510 = vunpack.c.l.bf16 %v1493
      %v1511 = vunpack.c.l.bf16 %v1494
      %v1512 = vunpack.c.l.bf16 %v1495
      %v1513 = vunpack.c.l.bf16 %v1496
      %v1514 = vunpack.c.l.bf16 %v1497
      %v1515 = vunpack.c.l.bf16 %v1498
      %v1516 = vunpack.c.l.bf16 %v1499
      %v1517 = vunpack.c.l.bf16 %v1500
      %v1518 = vunpack.c.l.bf16 %v1501
      %v1519 = vunpack.c.l.bf16 %v1502
      %v1520 = vunpack.c.l.bf16 %v1503
      %v1521 = vunpack.c.l.bf16 %v1504
      %v1522 = vrot.slane %v1505, 7
      %v1523 = vrot.slane %v1506, 7
      %v1524 = vrot.slane %v1507, 7
      %v1525 = vrot.slane %v1508, 7
      %v1526 = vrot.slane %v1509, 7
      %v1527 = vrot.slane %v1510, 7
      %v1528 = vrot.slane %v1511, 7
      %v1529 = vrot.slane %v1512, 7
      %v1530 = vrot.slane %v1513, 7
      %v1531 = vrot.slane %v1514, 7
      %v1532 = vrot.slane %v1515, 7
      %v1533 = vrot.slane %v1516, 7
      %v1534 = vrot.slane %v1517, 7
      %v1535 = vrot.slane %v1518, 7
      %v1536 = vrot.slane %v1519, 7
      %v1537 = vrot.slane %v1520, 7
      %v1538 = vrot.slane %v1521, 7
      %v1539 = vlaneseq
      %v1540 = vshrl.u32 %v1539, 7
      %vm1541 = vcmp.eq.s32.totalorder %v1540, 0
      %v1542 = vsel %vm1541, 0.0, %v1522
      %v1543 = vsel %vm1541, 0.0, %v1523
      %v1544 = vsel %vm1541, 0.0, %v1524
      %v1545 = vsel %vm1541, 0.0, %v1525
      %v1546 = vsel %vm1541, 0.0, %v1526
      %v1547 = vsel %vm1541, 0.0, %v1527
      %v1548 = vsel %vm1541, 0.0, %v1528
      %v1549 = vsel %vm1541, 0.0, %v1529
      %v1550 = vsel %vm1541, 0.0, %v1530
      %v1551 = vsel %vm1541, 0.0, %v1531
      %v1552 = vsel %vm1541, 0.0, %v1532
      %v1553 = vsel %vm1541, 0.0, %v1533
      %v1554 = vsel %vm1541, 0.0, %v1534
      %v1555 = vsel %vm1541, 0.0, %v1535
      %v1556 = vsel %vm1541, 0.0, %v1536
      %v1557 = vsel %vm1541, 0.0, %v1537
      %v1558 = vsel %vm1541, 0.0, %v1538
      %v1559 = vpack.c.bf16 %v1542, %v1542
      %v1560 = vpack.c.bf16 %v1543, %v1543
      %v1561 = vpack.c.bf16 %v1544, %v1544
      %v1562 = vpack.c.bf16 %v1545, %v1545
      %v1563 = vpack.c.bf16 %v1546, %v1546
      %v1564 = vpack.c.bf16 %v1547, %v1547
      %v1565 = vpack.c.bf16 %v1548, %v1548
      %v1566 = vpack.c.bf16 %v1549, %v1549
      %v1567 = vpack.c.bf16 %v1550, %v1550
      %v1568 = vpack.c.bf16 %v1551, %v1551
      %v1569 = vpack.c.bf16 %v1552, %v1552
      %v1570 = vpack.c.bf16 %v1553, %v1553
      %v1571 = vpack.c.bf16 %v1554, %v1554
      %v1572 = vpack.c.bf16 %v1555, %v1555
      %v1573 = vpack.c.bf16 %v1556, %v1556
      %v1574 = vpack.c.bf16 %v1557, %v1557
      %v1575 = vpack.c.bf16 %v1558, %v1558
      %1584 = vrot.lane.b32.xlu0 %v1560, 2
      %v1585 = vpop.permute.xlu0 %1584
      %1586 = vrot.lane.b32.xlu0 %v1562, 2
      %v1587 = vpop.permute.xlu0 %1586
      %1588 = vrot.lane.b32.xlu0 %v1564, 2
      %v1589 = vpop.permute.xlu0 %1588
      %1590 = vrot.lane.b32.xlu0 %v1566, 2
      %v1591 = vpop.permute.xlu0 %1590
      %1592 = vrot.lane.b32.xlu0 %v1568, 2
      %v1593 = vpop.permute.xlu0 %1592
      %1594 = vrot.lane.b32.xlu0 %v1570, 2
      %v1595 = vpop.permute.xlu0 %1594
      %1596 = vrot.lane.b32.xlu0 %v1572, 2
      %v1597 = vpop.permute.xlu0 %1596
      %1598 = vrot.lane.b32.xlu0 %v1574, 2
      %v1599 = vpop.permute.xlu0 %1598
      %1608 = vrot.lane.b32.xlu0 %v1561, 4
      %v1609 = vpop.permute.xlu0 %1608
      %1610 = vrot.lane.b32.xlu0 %v1563, 4
      %v1611 = vpop.permute.xlu0 %1610
      %1612 = vrot.lane.b32.xlu0 %v1565, 4
      %v1613 = vpop.permute.xlu0 %1612
      %1614 = vrot.lane.b32.xlu0 %v1567, 4
      %v1615 = vpop.permute.xlu0 %1614
      %1616 = vrot.lane.b32.xlu0 %v1569, 4
      %v1617 = vpop.permute.xlu0 %1616
      %1618 = vrot.lane.b32.xlu0 %v1571, 4
      %v1619 = vpop.permute.xlu0 %1618
      %1620 = vrot.lane.b32.xlu0 %v1573, 4
      %v1621 = vpop.permute.xlu0 %1620
      %1622 = vrot.lane.b32.xlu0 %v1575, 4
      %v1623 = vpop.permute.xlu0 %1622
      %vm1624 = vcmask 15360
      %v1627 = vsel %vm1624, %v1559, %v1585
      %v1630 = vsel %vm1624, %v1561, %v1587
      %v1633 = vsel %vm1624, %v1563, %v1589
      %v1636 = vsel %vm1624, %v1565, %v1591
      %v1639 = vsel %vm1624, %v1567, %v1593
      %v1642 = vsel %vm1624, %v1569, %v1595
      %v1645 = vsel %vm1624, %v1571, %v1597
      %v1648 = vsel %vm1624, %v1573, %v1599
      %v1650 = vsel %vm537, %v1627, %v1609
      %v1652 = vsel %vm537, %v1630, %v1611
      %v1654 = vsel %vm537, %v1633, %v1613
      %v1656 = vsel %vm537, %v1636, %v1615
      %v1658 = vsel %vm537, %v1639, %v1617
      %v1660 = vsel %vm537, %v1642, %v1619
      %v1662 = vsel %vm537, %v1645, %v1621
      %v1664 = vsel %vm537, %v1648, %v1623
      %v1665 = vld [vmem:[%s6] sm:$0x7]
      %v1674 = vunpack.c.l.b16 %v1472
      %v1675 = vunpack.c.l.b16 %v1474
      %v1676 = vunpack.c.l.b16 %v1476
      %v1677 = vunpack.c.l.b16 %v1478
      %v1678 = vunpack.c.l.b16 %v1480
      %v1679 = vunpack.c.l.b16 %v1482
      %v1680 = vunpack.c.l.b16 %v1484
      %v1681 = vunpack.c.l.b16 %v1486
      %v1682 = vpack.c.b16 %v1674, %v1674
      %v1683 = vpack.c.b16 %v1675, %v1675
      %v1684 = vpack.c.b16 %v1676, %v1676
      %v1685 = vpack.c.b16 %v1677, %v1677
      %v1686 = vpack.c.b16 %v1678, %v1678
      %v1687 = vpack.c.b16 %v1679, %v1679
      %v1688 = vpack.c.b16 %v1680, %v1680
      %v1689 = vpack.c.b16 %v1681, %v1681
      %1690 = vrot.lane.b32.xlu0 %v1682, 2
      %v1691 = vpop.permute.xlu0 %1690
      %1692 = vrot.lane.b32.xlu0 %v1683, 2
      %v1693 = vpop.permute.xlu0 %1692
      %1694 = vrot.lane.b32.xlu0 %v1684, 2
      %v1695 = vpop.permute.xlu0 %1694
      %1696 = vrot.lane.b32.xlu0 %v1685, 2
      %v1697 = vpop.permute.xlu0 %1696
      %1698 = vrot.lane.b32.xlu0 %v1686, 2
      %v1699 = vpop.permute.xlu0 %1698
      %1700 = vrot.lane.b32.xlu0 %v1687, 2
      %v1701 = vpop.permute.xlu0 %1700
      %1702 = vrot.lane.b32.xlu0 %v1688, 2
      %v1703 = vpop.permute.xlu0 %1702
      %1704 = vrot.lane.b32.xlu0 %v1689, 2
      %v1705 = vpop.permute.xlu0 %1704
      %v1714 = vunpack.c.l.b16 %v1473
      %v1715 = vunpack.c.l.b16 %v1475
      %v1716 = vunpack.c.l.b16 %v1477
      %v1717 = vunpack.c.l.b16 %v1479
      %v1718 = vunpack.c.l.b16 %v1481
      %v1719 = vunpack.c.l.b16 %v1483
      %v1720 = vunpack.c.l.b16 %v1485
      %v1721 = vunpack.c.l.b16 %v1487
      %v1722 = vpack.c.b16 %v1714, %v1714
      %v1723 = vpack.c.b16 %v1715, %v1715
      %v1724 = vpack.c.b16 %v1716, %v1716
      %v1725 = vpack.c.b16 %v1717, %v1717
      %v1726 = vpack.c.b16 %v1718, %v1718
      %v1727 = vpack.c.b16 %v1719, %v1719
      %v1728 = vpack.c.b16 %v1720, %v1720
      %v1729 = vpack.c.b16 %v1721, %v1721
      %1730 = vrot.lane.b32.xlu0 %v1722, 4
      %v1731 = vpop.permute.xlu0 %1730
      %1732 = vrot.lane.b32.xlu0 %v1723, 4
      %v1733 = vpop.permute.xlu0 %1732
      %1734 = vrot.lane.b32.xlu0 %v1724, 4
      %v1735 = vpop.permute.xlu0 %1734
      %1736 = vrot.lane.b32.xlu0 %v1725, 4
      %v1737 = vpop.permute.xlu0 %1736
      %1738 = vrot.lane.b32.xlu0 %v1726, 4
      %v1739 = vpop.permute.xlu0 %1738
      %1740 = vrot.lane.b32.xlu0 %v1727, 4
      %v1741 = vpop.permute.xlu0 %1740
      %1742 = vrot.lane.b32.xlu0 %v1728, 4
      %v1743 = vpop.permute.xlu0 %1742
      %1744 = vrot.lane.b32.xlu0 %v1729, 4
      %v1745 = vpop.permute.xlu0 %1744
      %v1748 = vsel %vm1624, %v1471, %v1691
      %v1751 = vsel %vm1624, %v1473, %v1693
      %v1754 = vsel %vm1624, %v1475, %v1695
      %v1757 = vsel %vm1624, %v1477, %v1697
      %v1760 = vsel %vm1624, %v1479, %v1699
      %v1763 = vsel %vm1624, %v1481, %v1701
      %v1766 = vsel %vm1624, %v1483, %v1703
      %v1769 = vsel %vm1624, %v1485, %v1705
      %v1771 = vsel %vm537, %v1748, %v1731
      %v1773 = vsel %vm537, %v1751, %v1733
      %v1775 = vsel %vm537, %v1754, %v1735
      %v1777 = vsel %vm537, %v1757, %v1737
      %v1779 = vsel %vm537, %v1760, %v1739
      %v1781 = vsel %vm537, %v1763, %v1741
      %v1783 = vsel %vm537, %v1766, %v1743
      %v1785 = vsel %vm537, %v1769, %v1745
      %s1786 = scalar_lea.vmem %s6, 4
      %v1787 = vld [vmem:[%s1786] sm:$0x7]
      %v1796 = vunpack.c.l.b16 %v1771
      %v1797 = vunpack.c.l.b16 %v1773
      %v1798 = vunpack.c.l.b16 %v1775
      %v1799 = vunpack.c.l.b16 %v1777
      %v1800 = vunpack.c.l.b16 %v1779
      %v1801 = vunpack.c.l.b16 %v1781
      %v1802 = vunpack.c.l.b16 %v1783
      %v1803 = vunpack.c.l.b16 %v1785
      %v1804 = vpack.c.b16 %v1797, %v1796
      %v1805 = vpack.c.b16 %v1799, %v1798
      %v1806 = vpack.c.b16 %v1801, %v1800
      %v1807 = vpack.c.b16 %v1803, %v1802
      %vm1808 = vcmask 48128
      %v1810 = vsel %vm1808, %v1804, 0
      %v1813 = vsel %vm1808, %v1805, 0
      %v1816 = vsel %vm1808, %v1806, 0
      %v1819 = vsel %vm1808, %v1807, 0
      %vm1821 = vcmask 1042432
      %v1823 = vsel %vm1821, %v1787, 0
      %1825 = vmatprep.subr.bf16.mxu0 0
      %1826 = vmatpush1.bf16.msra.mxu0 0
      %1827 = vmatprep.subr.bf16.mxu0 0
      %1828 = vmatpush1.bf16.msra.mxu0 0
      %1829 = vmatprep.subr.bf16.mxu0 0
      %1830 = vmatpush1.bf16.msra.mxu0 0
      %1831 = vmatprep.subr.bf16.mxu0 0
      %1832 = vmatpush1.bf16.msra.mxu0 0
      %1833 = vmatprep.subr.bf16.mxu0 0
      %1834 = vmatpush1.bf16.msra.mxu0 0
      %1835 = vmatprep.subr.bf16.mxu0 0
      %1836 = vmatpush1.bf16.msra.mxu0 0
      %1837 = vmatprep.subr.bf16.mxu0 0
      %1838 = vmatpush1.bf16.msra.mxu0 0
      %1839 = vmatprep.subr.bf16.mxu0 0
      %1840 = vmatpush1.bf16.msra.mxu0 %v1823
      %1841 = vmatprep.subr.bf16.mxu0 0
      %1842 = vmatpush2.bf16.msra.mxu0 0
      %1843 = vmatprep.subr.bf16.mxu0 0
      %1844 = vmatpush2.bf16.msra.mxu0 0
      %1845 = vmatprep.subr.bf16.mxu0 0
      %1846 = vmatpush2.bf16.msra.mxu0 0
      %1847 = vmatprep.subr.bf16.mxu0 0
      %1848 = vmatpush2.bf16.msra.mxu0 0
      %1849 = vmatprep.subr.bf16.mxu0 0
      %1850 = vmatpush2.bf16.msra.mxu0 0
      %1851 = vmatprep.subr.bf16.mxu0 0
      %1852 = vmatpush2.bf16.msra.mxu0 0
      %1853 = vmatprep.subr.bf16.mxu0 0
      %1854 = vmatpush2.bf16.msra.mxu0 0
      %1855 = vmatprep.subr.bf16.mxu0 0
      %1856 = vmatpush2.bf16.msra.mxu0 0
      %1857 = vmatprep.mubr.bf16.mxu0 0
      %1858 = vmatmul.mubr.bf16.gmra.mxu0 %v1810
      %v1859 = vpop.f32.mrf.mxu0
      %v1860 = vadd.f32 0.0, %v1859
      %v1861 = vpop.f32.mrf.mxu0
      %v1862 = vpop.f32.mrf.mxu0
      %v1863 = vadd.f32 0.0, %v1862
      %v1864 = vpop.f32.mrf.mxu0
      %1865 = vmatprep.mubr.bf16.mxu0 0
      %1866 = vmatmul.mubr.bf16.gmra.mxu0 %v1813
      %v1867 = vpop.f32.mrf.mxu0
      %v1868 = vadd.f32 0.0, %v1867
      %v1869 = vpop.f32.mrf.mxu0
      %v1870 = vpop.f32.mrf.mxu0
      %v1871 = vadd.f32 0.0, %v1870
      %v1872 = vpop.f32.mrf.mxu0
      %1873 = vmatprep.mubr.bf16.mxu0 0
      %1874 = vmatmul.mubr.bf16.gmra.mxu0 %v1816
      %v1875 = vpop.f32.mrf.mxu0
      %v1876 = vadd.f32 0.0, %v1875
      %v1877 = vpop.f32.mrf.mxu0
      %v1878 = vpop.f32.mrf.mxu0
      %v1879 = vadd.f32 0.0, %v1878
      %v1880 = vpop.f32.mrf.mxu0
      %1881 = vmatprep.mubr.bf16.mxu0 0
      %1882 = vmatmul.mubr.bf16.gmra.mxu0 %v1819
      %v1883 = vpop.f32.mrf.mxu0
      %v1884 = vadd.f32 0.0, %v1883
      %v1885 = vpop.f32.mrf.mxu0
      %v1886 = vpop.f32.mrf.mxu0
      %v1887 = vadd.f32 0.0, %v1886
      %v1888 = vpop.f32.mrf.mxu0
      %1889 = vdwg.mxu0
      %v1898 = vunpack.c.l.b16 %v1650
      %v1899 = vunpack.c.l.b16 %v1652
      %v1900 = vunpack.c.l.b16 %v1654
      %v1901 = vunpack.c.l.b16 %v1656
      %v1902 = vunpack.c.l.b16 %v1658
      %v1903 = vunpack.c.l.b16 %v1660
      %v1904 = vunpack.c.l.b16 %v1662
      %v1905 = vunpack.c.l.b16 %v1664
      %v1906 = vpack.c.b16 %v1899, %v1898
      %v1907 = vpack.c.b16 %v1901, %v1900
      %v1908 = vpack.c.b16 %v1903, %v1902
      %v1909 = vpack.c.b16 %v1905, %v1904
      %v1911 = vsel %vm1808, %v1906, 0
      %v1914 = vsel %vm1808, %v1907, 0
      %v1917 = vsel %vm1808, %v1908, 0
      %v1920 = vsel %vm1808, %v1909, 0
      %v1923 = vsel %vm1821, %v1665, 0
      %1925 = vmatprep.subr.bf16.mxu0 0
      %1926 = vmatpush1.bf16.msra.mxu0 0
      %1927 = vmatprep.subr.bf16.mxu0 0
      %1928 = vmatpush1.bf16.msra.mxu0 0
      %1929 = vmatprep.subr.bf16.mxu0 0
      %1930 = vmatpush1.bf16.msra.mxu0 0
      %1931 = vmatprep.subr.bf16.mxu0 0
      %1932 = vmatpush1.bf16.msra.mxu0 0
      %1933 = vmatprep.subr.bf16.mxu0 0
      %1934 = vmatpush1.bf16.msra.mxu0 0
      %1935 = vmatprep.subr.bf16.mxu0 0
      %1936 = vmatpush1.bf16.msra.mxu0 0
      %1937 = vmatprep.subr.bf16.mxu0 0
      %1938 = vmatpush1.bf16.msra.mxu0 0
      %1939 = vmatprep.subr.bf16.mxu0 0
      %1940 = vmatpush1.bf16.msra.mxu0 %v1923
      %1941 = vmatprep.subr.bf16.mxu0 0
      %1942 = vmatpush2.bf16.msra.mxu0 0
      %1943 = vmatprep.subr.bf16.mxu0 0
      %1944 = vmatpush2.bf16.msra.mxu0 0
      %1945 = vmatprep.subr.bf16.mxu0 0
      %1946 = vmatpush2.bf16.msra.mxu0 0
      %1947 = vmatprep.subr.bf16.mxu0 0
      %1948 = vmatpush2.bf16.msra.mxu0 0
      %1949 = vmatprep.subr.bf16.mxu0 0
      %1950 = vmatpush2.bf16.msra.mxu0 0
      %1951 = vmatprep.subr.bf16.mxu0 0
      %1952 = vmatpush2.bf16.msra.mxu0 0
      %1953 = vmatprep.subr.bf16.mxu0 0
      %1954 = vmatpush2.bf16.msra.mxu0 0
      %1955 = vmatprep.subr.bf16.mxu0 0
      %1956 = vmatpush2.bf16.msra.mxu0 0
      %1957 = vmatprep.mubr.bf16.mxu0 0
      %1958 = vmatmul.mubr.bf16.gmra.mxu0 %v1911
      %v1959 = vpop.f32.mrf.mxu0
      %v1960 = vadd.f32 %v1860, %v1959
      %v1961 = vpop.f32.mrf.mxu0
      %v1962 = vpop.f32.mrf.mxu0
      %v1963 = vadd.f32 %v1863, %v1962
      %v1964 = vpop.f32.mrf.mxu0
      %1965 = vmatprep.mubr.bf16.mxu0 0
      %1966 = vmatmul.mubr.bf16.gmra.mxu0 %v1914
      %v1967 = vpop.f32.mrf.mxu0
      %v1968 = vadd.f32 %v1868, %v1967
      %v1969 = vpop.f32.mrf.mxu0
      %v1970 = vpop.f32.mrf.mxu0
      %v1971 = vadd.f32 %v1871, %v1970
      %v1972 = vpop.f32.mrf.mxu0
      %1973 = vmatprep.mubr.bf16.mxu0 0
      %1974 = vmatmul.mubr.bf16.gmra.mxu0 %v1917
      %v1975 = vpop.f32.mrf.mxu0
      %v1976 = vadd.f32 %v1876, %v1975
      %v1977 = vpop.f32.mrf.mxu0
      %v1978 = vpop.f32.mrf.mxu0
      %v1979 = vadd.f32 %v1879, %v1978
      %v1980 = vpop.f32.mrf.mxu0
      %1981 = vmatprep.mubr.bf16.mxu0 0
      %1982 = vmatmul.mubr.bf16.gmra.mxu0 %v1920
      %v1983 = vpop.f32.mrf.mxu0
      %v1984 = vadd.f32 %v1884, %v1983
      %v1985 = vpop.f32.mrf.mxu0
      %v1986 = vpop.f32.mrf.mxu0
      %v1987 = vadd.f32 %v1887, %v1986
      %v1988 = vpop.f32.mrf.mxu0
      %1989 = vdwg.mxu0
      %v1998 = vunpack.c.l.b16 %v1489
      %v1999 = vunpack.c.l.b16 %v1491
      %v2000 = vunpack.c.l.b16 %v1493
      %v2001 = vunpack.c.l.b16 %v1495
      %v2002 = vunpack.c.l.b16 %v1497
      %v2003 = vunpack.c.l.b16 %v1499
      %v2004 = vunpack.c.l.b16 %v1501
      %v2005 = vunpack.c.l.b16 %v1503
      %v2006 = vpack.c.b16 %v1998, %v1998
      %v2007 = vpack.c.b16 %v1999, %v1999
      %v2008 = vpack.c.b16 %v2000, %v2000
      %v2009 = vpack.c.b16 %v2001, %v2001
      %v2010 = vpack.c.b16 %v2002, %v2002
      %v2011 = vpack.c.b16 %v2003, %v2003
      %v2012 = vpack.c.b16 %v2004, %v2004
      %v2013 = vpack.c.b16 %v2005, %v2005
      %2014 = vrot.lane.b32.xlu0 %v2006, 2
      %v2015 = vpop.permute.xlu0 %2014
      %2016 = vrot.lane.b32.xlu0 %v2007, 2
      %v2017 = vpop.permute.xlu0 %2016
      %2018 = vrot.lane.b32.xlu0 %v2008, 2
      %v2019 = vpop.permute.xlu0 %2018
      %2020 = vrot.lane.b32.xlu0 %v2009, 2
      %v2021 = vpop.permute.xlu0 %2020
      %2022 = vrot.lane.b32.xlu0 %v2010, 2
      %v2023 = vpop.permute.xlu0 %2022
      %2024 = vrot.lane.b32.xlu0 %v2011, 2
      %v2025 = vpop.permute.xlu0 %2024
      %2026 = vrot.lane.b32.xlu0 %v2012, 2
      %v2027 = vpop.permute.xlu0 %2026
      %2028 = vrot.lane.b32.xlu0 %v2013, 2
      %v2029 = vpop.permute.xlu0 %2028
      %v2038 = vunpack.c.l.b16 %v1490
      %v2039 = vunpack.c.l.b16 %v1492
      %v2040 = vunpack.c.l.b16 %v1494
      %v2041 = vunpack.c.l.b16 %v1496
      %v2042 = vunpack.c.l.b16 %v1498
      %v2043 = vunpack.c.l.b16 %v1500
      %v2044 = vunpack.c.l.b16 %v1502
      %v2045 = vunpack.c.l.b16 %v1504
      %v2046 = vpack.c.b16 %v2038, %v2038
      %v2047 = vpack.c.b16 %v2039, %v2039
      %v2048 = vpack.c.b16 %v2040, %v2040
      %v2049 = vpack.c.b16 %v2041, %v2041
      %v2050 = vpack.c.b16 %v2042, %v2042
      %v2051 = vpack.c.b16 %v2043, %v2043
      %v2052 = vpack.c.b16 %v2044, %v2044
      %v2053 = vpack.c.b16 %v2045, %v2045
      %2054 = vrot.lane.b32.xlu0 %v2046, 4
      %v2055 = vpop.permute.xlu0 %2054
      %2056 = vrot.lane.b32.xlu0 %v2047, 4
      %v2057 = vpop.permute.xlu0 %2056
      %2058 = vrot.lane.b32.xlu0 %v2048, 4
      %v2059 = vpop.permute.xlu0 %2058
      %2060 = vrot.lane.b32.xlu0 %v2049, 4
      %v2061 = vpop.permute.xlu0 %2060
      %2062 = vrot.lane.b32.xlu0 %v2050, 4
      %v2063 = vpop.permute.xlu0 %2062
      %2064 = vrot.lane.b32.xlu0 %v2051, 4
      %v2065 = vpop.permute.xlu0 %2064
      %2066 = vrot.lane.b32.xlu0 %v2052, 4
      %v2067 = vpop.permute.xlu0 %2066
      %2068 = vrot.lane.b32.xlu0 %v2053, 4
      %v2069 = vpop.permute.xlu0 %2068
      %v2072 = vsel %vm1624, %v1488, %v2015
      %v2075 = vsel %vm1624, %v1490, %v2017
      %v2078 = vsel %vm1624, %v1492, %v2019
      %v2081 = vsel %vm1624, %v1494, %v2021
      %v2084 = vsel %vm1624, %v1496, %v2023
      %v2087 = vsel %vm1624, %v1498, %v2025
      %v2090 = vsel %vm1624, %v1500, %v2027
      %v2093 = vsel %vm1624, %v1502, %v2029
      %v2095 = vsel %vm537, %v2072, %v2055
      %v2097 = vsel %vm537, %v2075, %v2057
      %v2099 = vsel %vm537, %v2078, %v2059
      %v2101 = vsel %vm537, %v2081, %v2061
      %v2103 = vsel %vm537, %v2084, %v2063
      %v2105 = vsel %vm537, %v2087, %v2065
      %v2107 = vsel %vm537, %v2090, %v2067
      %v2109 = vsel %vm537, %v2093, %v2069
      %s2110 = scalar_lea.vmem %s6, 8
      %v2111 = vld [vmem:[%s2110] sm:$0x7]
      %v2120 = vunpack.c.l.b16 %v2095
      %v2121 = vunpack.c.l.b16 %v2097
      %v2122 = vunpack.c.l.b16 %v2099
      %v2123 = vunpack.c.l.b16 %v2101
      %v2124 = vunpack.c.l.b16 %v2103
      %v2125 = vunpack.c.l.b16 %v2105
      %v2126 = vunpack.c.l.b16 %v2107
      %v2127 = vunpack.c.l.b16 %v2109
      %v2128 = vpack.c.b16 %v2121, %v2120
      %v2129 = vpack.c.b16 %v2123, %v2122
      %v2130 = vpack.c.b16 %v2125, %v2124
      %v2131 = vpack.c.b16 %v2127, %v2126
      %v2133 = vsel %vm1808, %v2128, 0
      %v2136 = vsel %vm1808, %v2129, 0
      %v2139 = vsel %vm1808, %v2130, 0
      %v2142 = vsel %vm1808, %v2131, 0
      %v2145 = vsel %vm1821, %v2111, 0
      %2147 = vmatprep.subr.bf16.mxu0 0
      %2148 = vmatpush1.bf16.msra.mxu0 0
      %2149 = vmatprep.subr.bf16.mxu0 0
      %2150 = vmatpush1.bf16.msra.mxu0 0
      %2151 = vmatprep.subr.bf16.mxu0 0
      %2152 = vmatpush1.bf16.msra.mxu0 0
      %2153 = vmatprep.subr.bf16.mxu0 0
      %2154 = vmatpush1.bf16.msra.mxu0 0
      %2155 = vmatprep.subr.bf16.mxu0 0
      %2156 = vmatpush1.bf16.msra.mxu0 0
      %2157 = vmatprep.subr.bf16.mxu0 0
      %2158 = vmatpush1.bf16.msra.mxu0 0
      %2159 = vmatprep.subr.bf16.mxu0 0
      %2160 = vmatpush1.bf16.msra.mxu0 0
      %2161 = vmatprep.subr.bf16.mxu0 0
      %2162 = vmatpush1.bf16.msra.mxu0 %v2145
      %2163 = vmatprep.subr.bf16.mxu0 0
      %2164 = vmatpush2.bf16.msra.mxu0 0
      %2165 = vmatprep.subr.bf16.mxu0 0
      %2166 = vmatpush2.bf16.msra.mxu0 0
      %2167 = vmatprep.subr.bf16.mxu0 0
      %2168 = vmatpush2.bf16.msra.mxu0 0
      %2169 = vmatprep.subr.bf16.mxu0 0
      %2170 = vmatpush2.bf16.msra.mxu0 0
      %2171 = vmatprep.subr.bf16.mxu0 0
      %2172 = vmatpush2.bf16.msra.mxu0 0
      %2173 = vmatprep.subr.bf16.mxu0 0
      %2174 = vmatpush2.bf16.msra.mxu0 0
      %2175 = vmatprep.subr.bf16.mxu0 0
      %2176 = vmatpush2.bf16.msra.mxu0 0
      %2177 = vmatprep.subr.bf16.mxu0 0
      %2178 = vmatpush2.bf16.msra.mxu0 0
      %2179 = vmatprep.mubr.bf16.mxu0 0
      %2180 = vmatmul.mubr.bf16.gmra.mxu0 %v2133
      %v2181 = vpop.f32.mrf.mxu0
      %v2182 = vadd.f32 0.0, %v2181
      %v2183 = vpop.f32.mrf.mxu0
      %v2184 = vpop.f32.mrf.mxu0
      %v2185 = vadd.f32 0.0, %v2184
      %v2186 = vpop.f32.mrf.mxu0
      %2187 = vmatprep.mubr.bf16.mxu0 0
      %2188 = vmatmul.mubr.bf16.gmra.mxu0 %v2136
      %v2189 = vpop.f32.mrf.mxu0
      %v2190 = vadd.f32 0.0, %v2189
      %v2191 = vpop.f32.mrf.mxu0
      %v2192 = vpop.f32.mrf.mxu0
      %v2193 = vadd.f32 0.0, %v2192
      %v2194 = vpop.f32.mrf.mxu0
      %2195 = vmatprep.mubr.bf16.mxu0 0
      %2196 = vmatmul.mubr.bf16.gmra.mxu0 %v2139
      %v2197 = vpop.f32.mrf.mxu0
      %v2198 = vadd.f32 0.0, %v2197
      %v2199 = vpop.f32.mrf.mxu0
      %v2200 = vpop.f32.mrf.mxu0
      %v2201 = vadd.f32 0.0, %v2200
      %v2202 = vpop.f32.mrf.mxu0
      %2203 = vmatprep.mubr.bf16.mxu0 0
      %2204 = vmatmul.mubr.bf16.gmra.mxu0 %v2142
      %v2205 = vpop.f32.mrf.mxu0
      %v2206 = vadd.f32 0.0, %v2205
      %v2207 = vpop.f32.mrf.mxu0
      %v2208 = vpop.f32.mrf.mxu0
      %v2209 = vadd.f32 0.0, %v2208
      %v2210 = vpop.f32.mrf.mxu0
      %2211 = vdwg.mxu0
      %v2212 = vadd.f32 %v1960, %v2182
      %v2213 = vadd.f32 %v1963, %v2185
      %v2214 = vadd.f32 %v1968, %v2190
      %v2215 = vadd.f32 %v1971, %v2193
      %v2216 = vadd.f32 %v1976, %v2198
      %v2217 = vadd.f32 %v1979, %v2201
      %v2218 = vadd.f32 %v1984, %v2206
      %v2219 = vadd.f32 %v1987, %v2209
      %v2220 = vld [vmem:[%s7] sm:$0x1]
      %v2222 = vlaneseq
      %v2223 = vshrl.u32 %v2222, 7
      %v2224 = vsub.s32 0, %v2223
      %v2225 = vrot.slane %v2220, %v2224
      %v2227 = vadd.f32 %v2212, %v2225
      %v2228 = vadd.f32 %v2213, %v2225
      %v2229 = vadd.f32 %v2214, %v2225
      %v2230 = vadd.f32 %v2215, %v2225
      %v2231 = vadd.f32 %v2216, %v2225
      %v2232 = vadd.f32 %v2217, %v2225
      %v2233 = vadd.f32 %v2218, %v2225
      %v2234 = vadd.f32 %v2219, %v2225
      %v2235 = vsub.f32 0.0, %v2227
      %v2236 = vsub.f32 0.0, %v2228
      %v2237 = vsub.f32 0.0, %v2229
      %v2238 = vsub.f32 0.0, %v2230
      %v2239 = vsub.f32 0.0, %v2231
      %v2240 = vsub.f32 0.0, %v2232
      %v2241 = vsub.f32 0.0, %v2233
      %v2242 = vsub.f32 0.0, %v2234
      %v2243 = vmul.f32 %v2235, 1.442695
      %v2244 = vpow.pop %v2243
      %v2245 = vmul.f32 %v2236, 1.442695
      %v2246 = vpow.pop %v2245
      %v2247 = vmul.f32 %v2237, 1.442695
      %v2248 = vpow.pop %v2247
      %v2249 = vmul.f32 %v2238, 1.442695
      %v2250 = vpow.pop %v2249
      %v2251 = vmul.f32 %v2239, 1.442695
      %v2252 = vpow.pop %v2251
      %v2253 = vmul.f32 %v2240, 1.442695
      %v2254 = vpow.pop %v2253
      %v2255 = vmul.f32 %v2241, 1.442695
      %v2256 = vpow.pop %v2255
      %v2257 = vmul.f32 %v2242, 1.442695
      %v2258 = vpow.pop %v2257
      %v2259 = vadd.f32 %v2244, 1.0
      %v2260 = vadd.f32 %v2246, 1.0
      %v2261 = vadd.f32 %v2248, 1.0
      %v2262 = vadd.f32 %v2250, 1.0
      %v2263 = vadd.f32 %v2252, 1.0
      %v2264 = vadd.f32 %v2254, 1.0
      %v2265 = vadd.f32 %v2256, 1.0
      %v2266 = vadd.f32 %v2258, 1.0
      %v2267 = vrcp.pop %v2259
      %v2268 = vmul.f32 1.0, %v2267
      %v2269 = vrcp.pop %v2260
      %v2270 = vmul.f32 1.0, %v2269
      %v2271 = vrcp.pop %v2261
      %v2272 = vmul.f32 1.0, %v2271
      %v2273 = vrcp.pop %v2262
      %v2274 = vmul.f32 1.0, %v2273
      %v2275 = vrcp.pop %v2263
      %v2276 = vmul.f32 1.0, %v2275
      %v2277 = vrcp.pop %v2264
      %v2278 = vmul.f32 1.0, %v2277
      %v2279 = vrcp.pop %v2265
      %v2280 = vmul.f32 1.0, %v2279
      %v2281 = vrcp.pop %v2266
      %v2282 = vmul.f32 1.0, %v2281
      %v2283 = vmul.f32 %v2227, %v2268
      %v2284 = vmul.f32 %v2228, %v2270
      %v2285 = vmul.f32 %v2229, %v2272
      %v2286 = vmul.f32 %v2230, %v2274
      %v2287 = vmul.f32 %v2231, %v2276
      %v2288 = vmul.f32 %v2232, %v2278
      %v2289 = vmul.f32 %v2233, %v2280
      %v2290 = vmul.f32 %v2234, %v2282
      %v2291 = vpack.c.bf16 %v668, %v667
      %v2292 = vpack.c.bf16 %v670, %v669
      %v2293 = vpack.c.bf16 %v672, %v671
      %v2294 = vpack.c.bf16 %v674, %v673
      %v2299 = vunpack.c.l.b16 %v2291
      %v2300 = vunpack.c.h.b16 %v2291
      %v2301 = vunpack.c.l.b16 %v2292
      %v2302 = vunpack.c.h.b16 %v2292
      %v2303 = vunpack.c.l.b16 %v2293
      %v2304 = vunpack.c.h.b16 %v2293
      %v2305 = vunpack.c.l.b16 %v2294
      %v2306 = vunpack.c.h.b16 %v2294
      %v2307 = vpack.c.b16 %v2299, %v2299
      %v2308 = vpack.c.b16 %v2300, %v2300
      %v2309 = vpack.c.b16 %v2301, %v2301
      %v2310 = vpack.c.b16 %v2302, %v2302
      %v2311 = vpack.c.b16 %v2303, %v2303
      %v2312 = vpack.c.b16 %v2304, %v2304
      %v2313 = vpack.c.b16 %v2305, %v2305
      %v2314 = vpack.c.b16 %v2306, %v2306
      %v2315 = vpack.c.bf16 %v2284, %v2283
      %v2316 = vpack.c.bf16 %v2286, %v2285
      %v2317 = vpack.c.bf16 %v2288, %v2287
      %v2318 = vpack.c.bf16 %v2290, %v2289
      %v2323 = vunpack.c.l.b16 %v2315
      %v2324 = vunpack.c.h.b16 %v2315
      %v2325 = vunpack.c.l.b16 %v2316
      %v2326 = vunpack.c.h.b16 %v2316
      %v2327 = vunpack.c.l.b16 %v2317
      %v2328 = vunpack.c.h.b16 %v2317
      %v2329 = vunpack.c.l.b16 %v2318
      %v2330 = vunpack.c.h.b16 %v2318
      %v2331 = vpack.c.b16 %v2323, %v2323
      %v2332 = vpack.c.b16 %v2324, %v2324
      %v2333 = vpack.c.b16 %v2325, %v2325
      %v2334 = vpack.c.b16 %v2326, %v2326
      %v2335 = vpack.c.b16 %v2327, %v2327
      %v2336 = vpack.c.b16 %v2328, %v2328
      %v2337 = vpack.c.b16 %v2329, %v2329
      %v2338 = vpack.c.b16 %v2330, %v2330
      %2339 = vrot.lane.b32.xlu0 %v2331, 2
      %v2340 = vpop.permute.xlu0 %2339
      %2341 = vrot.lane.b32.xlu0 %v2332, 2
      %v2342 = vpop.permute.xlu0 %2341
      %2343 = vrot.lane.b32.xlu0 %v2333, 2
      %v2344 = vpop.permute.xlu0 %2343
      %2345 = vrot.lane.b32.xlu0 %v2334, 2
      %v2346 = vpop.permute.xlu0 %2345
      %2347 = vrot.lane.b32.xlu0 %v2335, 2
      %v2348 = vpop.permute.xlu0 %2347
      %2349 = vrot.lane.b32.xlu0 %v2336, 2
      %v2350 = vpop.permute.xlu0 %2349
      %2351 = vrot.lane.b32.xlu0 %v2337, 2
      %v2352 = vpop.permute.xlu0 %2351
      %2353 = vrot.lane.b32.xlu0 %v2338, 2
      %v2354 = vpop.permute.xlu0 %2353
      %v2357 = vsel %vm1624, %v2307, %v2340
      %v2361 = vsel %vm1624, %v2308, %v2342
      %v2365 = vsel %vm1624, %v2309, %v2344
      %v2369 = vsel %vm1624, %v2310, %v2346
      %v2373 = vsel %vm1624, %v2311, %v2348
      %v2377 = vsel %vm1624, %v2312, %v2350
      %v2381 = vsel %vm1624, %v2313, %v2352
      %v2385 = vsel %vm1624, %v2314, %v2354
      %vm2387 = vcmask 27648
      %2388 = vst.msk [vmem:[%s402] sm:$0xf] %vm2387, %v2357
      %2389 = vst.msk [vmem:[%s402 + $0x4] sm:$0xf] %vm2387, %v2361
      %2390 = vst.msk [vmem:[%s402 + $0x8] sm:$0xf] %vm2387, %v2365
      %2391 = vst.msk [vmem:[%s402 + $0xc] sm:$0xf] %vm2387, %v2369
      %2392 = vst.msk [vmem:[%s402 + $0x10] sm:$0xf] %vm2387, %v2373
      %2393 = vst.msk [vmem:[%s402 + $0x14] sm:$0xf] %vm2387, %v2377
      %2394 = vst.msk [vmem:[%s402 + $0x18] sm:$0xf] %vm2387, %v2381
      %2395 = vst.msk [vmem:[%s402 + $0x1c] sm:$0xf] %vm2387, %v2385
      %s2396 = smul.u32 8, %s24
      %p2397 = scmp.lt.s32.totalorder %s23, 1
      %s2398 = scalar_select %p2397, %s23, 1
      %p2399 = scmp.lt.s32.totalorder %s2396, 7
      %s2400 = scalar_select %p2399, %s2396, 7
      %s2401 = smul.addr %s2398, 8
      %s2402 = sadd.s32 %s2400, %s2401
      %s2403 = smul.addr %s2402, 4
      %s2404 = scalar_lea.vmem %s8, %s2403
      // Predicated region
      $region53: #{tpu_custom_call.1} parent=51 // pred_check
        %p2405 = pneg %p241
      $region54: #{tpu_custom_call.1} parent=51 // pred_check_branch
        %2407 = sbr.rel (%p2405) target = $region56
      $region55: #{tpu_custom_call.1} parent=51 // pred_region
        %s2408 = smul.u32 8, %s24
      $region56: #{tpu_custom_call.1} parent=51 // pred_fallthru
        _
    $region52: #{tpu_custom_call.1} parent=5 // pred_fallthru
      _
    %p2409 = scmp.le.s32.totalorder 2, %s14
    // Predicated region
    $region57: #{tpu_custom_call.1} parent=5 // pred_check
      %p2410 = pneg %p2409
    $region58: #{tpu_custom_call.1} parent=5 // pred_check_branch
      %2412 = sbr.rel (%p2410) target = $region60
    $region59: #{tpu_custom_call.1} parent=5 // pred_region
      %s2413 = ssub.s32 %s14, 2
      // Predicated region
      $region61: #{tpu_custom_call.1} parent=59 // pred_check
        %p2414 = pneg %p247
      $region62: #{tpu_custom_call.1} parent=59 // pred_check_branch
        %2416 = sbr.rel (%p2414) target = $region64
      $region63: #{tpu_custom_call.1} parent=59 // pred_region
        %s2417 = smul.u32 8, %s26
        %p2418 = scmp.lt.s32.totalorder %s25, 1
        %s2419 = scalar_select %p2418, %s25, 1
        %p2420 = scmp.lt.s32.totalorder %s2417, 7
        %s2421 = scalar_select %p2420, %s2417, 7
        %s2422 = smul.addr %s2419, 8
        %s2423 = sadd.s32 %s2421, %s2422
        %s2424 = smul.addr %s2423, 4
        %s2425 = scalar_lea.vmem %s8, %s2424
      $region64: #{tpu_custom_call.1} parent=59 // pred_fallthru
        _
    $region60: #{tpu_custom_call.1} parent=5 // pred_fallthru
      _
  $region6: #{tpu_custom_call.1} parent=0 // loop_footer
    %s18 = sadd.s32 1, %s14
  $region7: #{tpu_custom_call.1} parent=0 // loop_footer_branch
    %13 = sbr.rel target = $region3
  $region8: #{tpu_custom_call.1} parent=0 // loop_exit
    _

</llo_original>
